<compile_context>
chip_gen: v7x
topology: tpu7x:2x2x1
jax: 0.10.0
libtpu: 0.0.40
codegen_flags: <defaults>
</compile_context>

<pallas_src>
import jax
import jax.numpy as jnp
from jax import lax
from jax.experimental import pallas as pl
from jax.experimental.pallas import tpu as pltpu


def lstm_mlp_kernel(x_ref, w_ih_ref, w_hh_ref, b_ref,
                    w_fc2_ref, b_fc2_ref, w_fc1_ref, b_fc1_ref,
                    out_ref, xb_scratch):
    T, B, I = x_ref.shape
    H = w_hh_ref.shape[0]
    C = out_ref.shape[1]

    w_hh = w_hh_ref[...]          # (H, 4H) — loaded once, reused every step
    b = b_ref[...]                # (1, 4H)  (= b_ih + b_hh)

    # ---- Hoisted input projection + bias (off the serial recurrence path) ----
    # xb[t] = x[t] @ w_ih + b   for all T steps, written once to VMEM scratch.
    x = x_ref[...]                # (T, B, I)
    w_ih = w_ih_ref[...]          # (I, 4H)
    if I == 1:
        # degenerate K=1 contraction -> single broadcast multiply-add (VPU)
        xb = x * w_ih[None, :, :] + b[None, :, :]                  # (T, B, 4H)
    else:
        xb = (jnp.dot(x.reshape(T * B, I), w_ih,
                      preferred_element_type=jnp.float32) + b).reshape(T, B, 4 * H)
    xb_scratch[...] = xb

    # ---- Recurrence: h/c carried as values (vregs), no VMEM round-trip -------
    h0 = jnp.zeros((B, H), jnp.float32)
    c0 = jnp.zeros((B, H), jnp.float32)

    def step(t, carry):
        h, c = carry
        gates = xb_scratch[t] + jnp.dot(h, w_hh,
                                        preferred_element_type=jnp.float32)  # (B, 4H)
        i_g = jax.nn.sigmoid(gates[:, 0:H])
        f_g = jax.nn.sigmoid(gates[:, H:2 * H])
        g_g = jnp.tanh(gates[:, 2 * H:3 * H])
        o_g = jax.nn.sigmoid(gates[:, 3 * H:4 * H])
        c_new = f_g * c + i_g * g_g
        h_new = o_g * jnp.tanh(c_new)
        return (h_new, c_new)

    # T is static and tiny -> fully unroll for cross-iteration scheduling.
    h_last, _ = lax.fori_loop(0, T, step, (h0, c0), unroll=True)

    # ---- Epilogue: fc2 -> ReLU -> fc1 (out[:, -1, :] of the LSTM == h_T) -----
    z = jnp.dot(h_last, w_fc2_ref[...],
                preferred_element_type=jnp.float32) + b_fc2_ref[...]   # (B, H/4)
    z = jnp.maximum(z, 0.0)                                            # ReLU
    if C == 1:
        # N=1 matmul -> VPU multiply + lane reduction (avoid 1-wide MXU result)
        y = jnp.sum(z * w_fc1_ref[...].reshape(1, -1),
                    axis=-1, keepdims=True) + b_fc1_ref[...]
    else:
        y = jnp.dot(z, w_fc1_ref[...],
                    preferred_element_type=jnp.float32) + b_fc1_ref[...]
    out_ref[...] = y.astype(out_ref.dtype)


def simple_lstm_forward(x, params):
    """x: (B, T, I) float32. Returns (B, num_classes) float32."""
    B, T, I = x.shape
    H = params["w_hh"].shape[0]
    num_classes = params["w_fc1"].shape[1]
    x_tm = jnp.transpose(x, (1, 0, 2))   # (T, B, I) for leading-axis time indexing

    vmem = pl.BlockSpec(memory_space=pltpu.MemorySpace.VMEM)
    return pl.pallas_call(
        lstm_mlp_kernel,
        out_shape=jax.ShapeDtypeStruct((B, num_classes), jnp.float32),
        in_specs=[vmem] * 8,
        out_specs=vmem,
        scratch_shapes=[pltpu.VMEM((T, B, 4 * H), jnp.float32)],  # hoisted x-proj
    )(x_tm, params["w_ih"], params["w_hh"], params["b"],
      params["w_fc2"], params["b_fc2"], params["w_fc1"], params["b_fc1"])


def init_params(key, input_size=1, hidden_size=128, num_classes=1):
    """Deterministic init mirroring PyTorch default uniform(-1/sqrt(fan), 1/sqrt(fan))."""
    H, I, H4, C = hidden_size, input_size, hidden_size // 4, num_classes
    ks = jax.random.split(key, 8)
    k_lstm = 1.0 / jnp.sqrt(H)
    w_ih = jax.random.uniform(ks[0], (4 * H, I), jnp.float32, -k_lstm, k_lstm)
    w_hh = jax.random.uniform(ks[1], (4 * H, H), jnp.float32, -k_lstm, k_lstm)
    b_ih = jax.random.uniform(ks[2], (4 * H,), jnp.float32, -k_lstm, k_lstm)
    b_hh = jax.random.uniform(ks[3], (4 * H,), jnp.float32, -k_lstm, k_lstm)
    k2 = 1.0 / jnp.sqrt(H)
    w_fc2 = jax.random.uniform(ks[4], (H4, H), jnp.float32, -k2, k2)
    b_fc2 = jax.random.uniform(ks[5], (H4,), jnp.float32, -k2, k2)
    k1 = 1.0 / jnp.sqrt(H4)
    w_fc1 = jax.random.uniform(ks[6], (C, H4), jnp.float32, -k1, k1)
    b_fc1 = jax.random.uniform(ks[7], (C,), jnp.float32, -k1, k1)
    # Kernel-friendly (pre-transposed / fused-bias) layout.
    return {
        "w_ih": w_ih.T,                                  # (I, 4H)
        "w_hh": w_hh.T,                                  # (H, 4H)
        "b": (b_ih + b_hh).reshape(1, 4 * H),            # (1, 4H)
        "w_fc2": w_fc2.T,                                # (H, H/4)
        "b_fc2": b_fc2.reshape(1, H4),                   # (1, H/4)
        "w_fc1": w_fc1.T,                                # (H/4, C)
        "b_fc1": b_fc1.reshape(1, C),                    # (1, C)
    }


def reference_forward(x, params):
    """Pure-JAX reference of the PyTorch forward (for correctness check)."""
    B, T, I = x.shape
    H = params["w_hh"].shape[0]
    h = jnp.zeros((B, H), jnp.float32)
    c = jnp.zeros((B, H), jnp.float32)
    for t in range(T):
        gates = x[:, t, :] @ params["w_ih"] + h @ params["w_hh"] + params["b"]
        i_g = jax.nn.sigmoid(gates[:, 0:H])
        f_g = jax.nn.sigmoid(gates[:, H:2 * H])
        g_g = jnp.tanh(gates[:, 2 * H:3 * H])
        o_g = jax.nn.sigmoid(gates[:, 3 * H:4 * H])
        c = f_g * c + i_g * g_g
        h = o_g * jnp.tanh(c)
    z = jnp.maximum(h @ params["w_fc2"] + params["b_fc2"], 0.0)
    return z @ params["w_fc1"] + params["b_fc1"]


if __name__ == "__main__":
    B, T, I, H, C = 8, 8, 1, 128, 1   # module defaults: input_size=1, hidden=128, classes=1
    key = jax.random.PRNGKey(0)
    kx, kp = jax.random.split(key)
    x = jax.random.normal(kx, (B, T, I), jnp.float32)
    params = init_params(kp, input_size=I, hidden_size=H, num_classes=C)

    out = simple_lstm_forward(x, params)
    out = jax.block_until_ready(out)

    ref = reference_forward(x, params)
    assert out.shape == (B, C), out.shape
    assert jnp.allclose(out, ref, atol=2e-3, rtol=2e-3), (out, ref)
    print("KERNEL_OK")
</pallas_src>

<mosaic_0001>
module attributes {stable_mosaic.version = 11 : i64} {
  func.func @lstm_mlp_kernel(%arg0: memref<8x8x1xf32, #tpu.memory_space<vmem>>, %arg1: memref<1x512xf32, #tpu.memory_space<vmem>>, %arg2: memref<128x512xf32, #tpu.memory_space<vmem>>, %arg3: memref<1x512xf32, #tpu.memory_space<vmem>>, %arg4: memref<128x32xf32, #tpu.memory_space<vmem>>, %arg5: memref<1x32xf32, #tpu.memory_space<vmem>>, %arg6: memref<32x1xf32, #tpu.memory_space<vmem>>, %arg7: memref<1x1xf32, #tpu.memory_space<vmem>>, %arg8: memref<8x1xf32, #tpu.memory_space<vmem>>, %arg9: memref<8x8x512xf32, #tpu.memory_space<vmem>>) attributes {dimension_semantics = [], scalar_prefetch = 0 : i64, scratch_operands = 1 : i64, tpu.core_type = #tpu.core_type<tc>} {
    %c0 = arith.constant 0 : index
    %c0_0 = arith.constant 0 : index
    %0 = vector.load %arg2[%c0, %c0_0] : memref<128x512xf32, #tpu.memory_space<vmem>>, vector<128x512xf32>
    %c0_1 = arith.constant 0 : index
    %c0_2 = arith.constant 0 : index
    %1 = vector.load %arg3[%c0_1, %c0_2] : memref<1x512xf32, #tpu.memory_space<vmem>>, vector<1x512xf32>
    %c0_3 = arith.constant 0 : index
    %c0_4 = arith.constant 0 : index
    %c0_5 = arith.constant 0 : index
    %2 = vector.load %arg0[%c0_3, %c0_4, %c0_5] : memref<8x8x1xf32, #tpu.memory_space<vmem>>, vector<8x8x1xf32>
    %c0_6 = arith.constant 0 : index
    %c0_7 = arith.constant 0 : index
    %3 = vector.load %arg1[%c0_6, %c0_7] : memref<1x512xf32, #tpu.memory_space<vmem>>, vector<1x512xf32>
    %4 = vector.shape_cast %3 : vector<1x512xf32> to vector<1x1x512xf32>
    %5 = vector.broadcast %2 : vector<8x8x1xf32> to vector<8x8x512xf32>
    %6 = vector.broadcast %4 : vector<1x1x512xf32> to vector<8x8x512xf32>
    %7 = arith.mulf %5, %6 : vector<8x8x512xf32>
    %8 = vector.shape_cast %1 : vector<1x512xf32> to vector<1x1x512xf32>
    %9 = vector.broadcast %8 : vector<1x1x512xf32> to vector<8x8x512xf32>
    %10 = arith.addf %7, %9 : vector<8x8x512xf32>
    %c0_8 = arith.constant 0 : index
    %c0_9 = arith.constant 0 : index
    %c0_10 = arith.constant 0 : index
    %11 = vector.load %arg9[%c0_8, %c0_9, %c0_10] : memref<8x8x512xf32, #tpu.memory_space<vmem>>, vector<8x8x512xf32>
    tpu.vector_store %arg9[%c0_8, %c0_9, %c0_10], %10 {strides = array<i32>} : memref<8x8x512xf32, #tpu.memory_space<vmem>>, vector<8x8x512xf32>,
    %cst = arith.constant 0.000000e+00 : f32
    %12 = vector.broadcast %cst : f32 to vector<8x128xf32>
    %cst_11 = arith.constant 0.000000e+00 : f32
    %13 = vector.broadcast %cst_11 : f32 to vector<8x128xf32>
    %c0_i32 = arith.constant 0 : i32
    %14 = arith.index_cast %c0_i32 : i32 to index
    %c0_12 = arith.constant 0 : index
    %c0_13 = arith.constant 0 : index
    %15 = vector.load %arg9[%14, %c0_12, %c0_13] : memref<8x8x512xf32, #tpu.memory_space<vmem>>, vector<1x8x512xf32>
    %16 = vector.shape_cast %15 : vector<1x8x512xf32> to vector<8x512xf32>
    %cst_14 = arith.constant dense<0.000000e+00> : vector<8x512xf32>
    %17 = tpu.matmul %12, %0, %cst_14 {dimension_numbers = #tpu.dot_dimension_numbers<[1], [0], [0], [1], [0, 0, 1, 1], [], []>} : vector<8x128xf32>, vector<128x512xf32>, vector<8x512xf32> -> vector<8x512xf32>
    %18 = arith.addf %16, %17 : vector<8x512xf32>
    %19 = vector.extract_strided_slice %18 {offsets = [0, 0], sizes = [8, 128], strides = [1, 1]} : vector<8x512xf32> to vector<8x128xf32>
    %20 = arith.negf %19 : vector<8x128xf32>
    %21 = math.exp %20 : vector<8x128xf32>
    %cst_15 = arith.constant 1.000000e+00 : f32
    %22 = vector.broadcast %cst_15 : f32 to vector<8x128xf32>
    %23 = arith.addf %22, %21 : vector<8x128xf32>
    %24 = arith.divf %22, %23 : vector<8x128xf32>
    %25 = vector.extract_strided_slice %18 {offsets = [0, 128], sizes = [8, 128], strides = [1, 1]} : vector<8x512xf32> to vector<8x128xf32>
    %26 = arith.negf %25 : vector<8x128xf32>
    %27 = math.exp %26 : vector<8x128xf32>
    %cst_16 = arith.constant 1.000000e+00 : f32
    %28 = vector.broadcast %cst_16 : f32 to vector<8x128xf32>
    %29 = arith.addf %28, %27 : vector<8x128xf32>
    %30 = arith.divf %28, %29 : vector<8x128xf32>
    %31 = vector.extract_strided_slice %18 {offsets = [0, 256], sizes = [8, 128], strides = [1, 1]} : vector<8x512xf32> to vector<8x128xf32>
    %32 = math.tanh %31 : vector<8x128xf32>
    %33 = vector.extract_strided_slice %18 {offsets = [0, 384], sizes = [8, 128], strides = [1, 1]} : vector<8x512xf32> to vector<8x128xf32>
    %34 = arith.negf %33 : vector<8x128xf32>
    %35 = math.exp %34 : vector<8x128xf32>
    %cst_17 = arith.constant 1.000000e+00 : f32
    %36 = vector.broadcast %cst_17 : f32 to vector<8x128xf32>
    %37 = arith.addf %36, %35 : vector<8x128xf32>
    %38 = arith.divf %36, %37 : vector<8x128xf32>
    %39 = arith.mulf %30, %13 : vector<8x128xf32>
    %40 = arith.mulf %24, %32 : vector<8x128xf32>
    %41 = arith.addf %39, %40 : vector<8x128xf32>
    %42 = math.tanh %41 : vector<8x128xf32>
    %43 = arith.mulf %38, %42 : vector<8x128xf32>
    %c1_i32 = arith.constant 1 : i32
    %44 = arith.index_cast %c1_i32 : i32 to index
    %c0_18 = arith.constant 0 : index
    %c0_19 = arith.constant 0 : index
    %45 = vector.load %arg9[%44, %c0_18, %c0_19] : memref<8x8x512xf32, #tpu.memory_space<vmem>>, vector<1x8x512xf32>
    %46 = vector.shape_cast %45 : vector<1x8x512xf32> to vector<8x512xf32>
    %cst_20 = arith.constant dense<0.000000e+00> : vector<8x512xf32>
    %47 = tpu.matmul %43, %0, %cst_20 {dimension_numbers = #tpu.dot_dimension_numbers<[1], [0], [0], [1], [0, 0, 1, 1], [], []>} : vector<8x128xf32>, vector<128x512xf32>, vector<8x512xf32> -> vector<8x512xf32>
    %48 = arith.addf %46, %47 : vector<8x512xf32>
    %49 = vector.extract_strided_slice %48 {offsets = [0, 0], sizes = [8, 128], strides = [1, 1]} : vector<8x512xf32> to vector<8x128xf32>
    %50 = arith.negf %49 : vector<8x128xf32>
    %51 = math.exp %50 : vector<8x128xf32>
    %cst_21 = arith.constant 1.000000e+00 : f32
    %52 = vector.broadcast %cst_21 : f32 to vector<8x128xf32>
    %53 = arith.addf %52, %51 : vector<8x128xf32>
    %54 = arith.divf %52, %53 : vector<8x128xf32>
    %55 = vector.extract_strided_slice %48 {offsets = [0, 128], sizes = [8, 128], strides = [1, 1]} : vector<8x512xf32> to vector<8x128xf32>
    %56 = arith.negf %55 : vector<8x128xf32>
    %57 = math.exp %56 : vector<8x128xf32>
    %cst_22 = arith.constant 1.000000e+00 : f32
    %58 = vector.broadcast %cst_22 : f32 to vector<8x128xf32>
    %59 = arith.addf %58, %57 : vector<8x128xf32>
    %60 = arith.divf %58, %59 : vector<8x128xf32>
    %61 = vector.extract_strided_slice %48 {offsets = [0, 256], sizes = [8, 128], strides = [1, 1]} : vector<8x512xf32> to vector<8x128xf32>
    %62 = math.tanh %61 : vector<8x128xf32>
    %63 = vector.extract_strided_slice %48 {offsets = [0, 384], sizes = [8, 128], strides = [1, 1]} : vector<8x512xf32> to vector<8x128xf32>
    %64 = arith.negf %63 : vector<8x128xf32>
    %65 = math.exp %64 : vector<8x128xf32>
    %cst_23 = arith.constant 1.000000e+00 : f32
    %66 = vector.broadcast %cst_23 : f32 to vector<8x128xf32>
    %67 = arith.addf %66, %65 : vector<8x128xf32>
    %68 = arith.divf %66, %67 : vector<8x128xf32>
    %69 = arith.mulf %60, %41 : vector<8x128xf32>
    %70 = arith.mulf %54, %62 : vector<8x128xf32>
    %71 = arith.addf %69, %70 : vector<8x128xf32>
    %72 = math.tanh %71 : vector<8x128xf32>
    %73 = arith.mulf %68, %72 : vector<8x128xf32>
    %c2_i32 = arith.constant 2 : i32
    %74 = arith.index_cast %c2_i32 : i32 to index
    %c0_24 = arith.constant 0 : index
    %c0_25 = arith.constant 0 : index
    %75 = vector.load %arg9[%74, %c0_24, %c0_25] : memref<8x8x512xf32, #tpu.memory_space<vmem>>, vector<1x8x512xf32>
    %76 = vector.shape_cast %75 : vector<1x8x512xf32> to vector<8x512xf32>
    %cst_26 = arith.constant dense<0.000000e+00> : vector<8x512xf32>
    %77 = tpu.matmul %73, %0, %cst_26 {dimension_numbers = #tpu.dot_dimension_numbers<[1], [0], [0], [1], [0, 0, 1, 1], [], []>} : vector<8x128xf32>, vector<128x512xf32>, vector<8x512xf32> -> vector<8x512xf32>
    %78 = arith.addf %76, %77 : vector<8x512xf32>
    %79 = vector.extract_strided_slice %78 {offsets = [0, 0], sizes = [8, 128], strides = [1, 1]} : vector<8x512xf32> to vector<8x128xf32>
    %80 = arith.negf %79 : vector<8x128xf32>
    %81 = math.exp %80 : vector<8x128xf32>
    %cst_27 = arith.constant 1.000000e+00 : f32
    %82 = vector.broadcast %cst_27 : f32 to vector<8x128xf32>
    %83 = arith.addf %82, %81 : vector<8x128xf32>
    %84 = arith.divf %82, %83 : vector<8x128xf32>
    %85 = vector.extract_strided_slice %78 {offsets = [0, 128], sizes = [8, 128], strides = [1, 1]} : vector<8x512xf32> to vector<8x128xf32>
    %86 = arith.negf %85 : vector<8x128xf32>
    %87 = math.exp %86 : vector<8x128xf32>
    %cst_28 = arith.constant 1.000000e+00 : f32
    %88 = vector.broadcast %cst_28 : f32 to vector<8x128xf32>
    %89 = arith.addf %88, %87 : vector<8x128xf32>
    %90 = arith.divf %88, %89 : vector<8x128xf32>
    %91 = vector.extract_strided_slice %78 {offsets = [0, 256], sizes = [8, 128], strides = [1, 1]} : vector<8x512xf32> to vector<8x128xf32>
    %92 = math.tanh %91 : vector<8x128xf32>
    %93 = vector.extract_strided_slice %78 {offsets = [0, 384], sizes = [8, 128], strides = [1, 1]} : vector<8x512xf32> to vector<8x128xf32>
    %94 = arith.negf %93 : vector<8x128xf32>
    %95 = math.exp %94 : vector<8x128xf32>
    %cst_29 = arith.constant 1.000000e+00 : f32
    %96 = vector.broadcast %cst_29 : f32 to vector<8x128xf32>
    %97 = arith.addf %96, %95 : vector<8x128xf32>
    %98 = arith.divf %96, %97 : vector<8x128xf32>
    %99 = arith.mulf %90, %71 : vector<8x128xf32>
    %100 = arith.mulf %84, %92 : vector<8x128xf32>
    %101 = arith.addf %99, %100 : vector<8x128xf32>
    %102 = math.tanh %101 : vector<8x128xf32>
    %103 = arith.mulf %98, %102 : vector<8x128xf32>
    %c3_i32 = arith.constant 3 : i32
    %104 = arith.index_cast %c3_i32 : i32 to index
    %c0_30 = arith.constant 0 : index
    %c0_31 = arith.constant 0 : index
    %105 = vector.load %arg9[%104, %c0_30, %c0_31] : memref<8x8x512xf32, #tpu.memory_space<vmem>>, vector<1x8x512xf32>
    %106 = vector.shape_cast %105 : vector<1x8x512xf32> to vector<8x512xf32>
    %cst_32 = arith.constant dense<0.000000e+00> : vector<8x512xf32>
    %107 = tpu.matmul %103, %0, %cst_32 {dimension_numbers = #tpu.dot_dimension_numbers<[1], [0], [0], [1], [0, 0, 1, 1], [], []>} : vector<8x128xf32>, vector<128x512xf32>, vector<8x512xf32> -> vector<8x512xf32>
    %108 = arith.addf %106, %107 : vector<8x512xf32>
    %109 = vector.extract_strided_slice %108 {offsets = [0, 0], sizes = [8, 128], strides = [1, 1]} : vector<8x512xf32> to vector<8x128xf32>
    %110 = arith.negf %109 : vector<8x128xf32>
    %111 = math.exp %110 : vector<8x128xf32>
    %cst_33 = arith.constant 1.000000e+00 : f32
    %112 = vector.broadcast %cst_33 : f32 to vector<8x128xf32>
    %113 = arith.addf %112, %111 : vector<8x128xf32>
    %114 = arith.divf %112, %113 : vector<8x128xf32>
    %115 = vector.extract_strided_slice %108 {offsets = [0, 128], sizes = [8, 128], strides = [1, 1]} : vector<8x512xf32> to vector<8x128xf32>
    %116 = arith.negf %115 : vector<8x128xf32>
    %117 = math.exp %116 : vector<8x128xf32>
    %cst_34 = arith.constant 1.000000e+00 : f32
    %118 = vector.broadcast %cst_34 : f32 to vector<8x128xf32>
    %119 = arith.addf %118, %117 : vector<8x128xf32>
    %120 = arith.divf %118, %119 : vector<8x128xf32>
    %121 = vector.extract_strided_slice %108 {offsets = [0, 256], sizes = [8, 128], strides = [1, 1]} : vector<8x512xf32> to vector<8x128xf32>
    %122 = math.tanh %121 : vector<8x128xf32>
    %123 = vector.extract_strided_slice %108 {offsets = [0, 384], sizes = [8, 128], strides = [1, 1]} : vector<8x512xf32> to vector<8x128xf32>
    %124 = arith.negf %123 : vector<8x128xf32>
    %125 = math.exp %124 : vector<8x128xf32>
    %cst_35 = arith.constant 1.000000e+00 : f32
    %126 = vector.broadcast %cst_35 : f32 to vector<8x128xf32>
    %127 = arith.addf %126, %125 : vector<8x128xf32>
    %128 = arith.divf %126, %127 : vector<8x128xf32>
    %129 = arith.mulf %120, %101 : vector<8x128xf32>
    %130 = arith.mulf %114, %122 : vector<8x128xf32>
    %131 = arith.addf %129, %130 : vector<8x128xf32>
    %132 = math.tanh %131 : vector<8x128xf32>
    %133 = arith.mulf %128, %132 : vector<8x128xf32>
    %c4_i32 = arith.constant 4 : i32
    %134 = arith.index_cast %c4_i32 : i32 to index
    %c0_36 = arith.constant 0 : index
    %c0_37 = arith.constant 0 : index
    %135 = vector.load %arg9[%134, %c0_36, %c0_37] : memref<8x8x512xf32, #tpu.memory_space<vmem>>, vector<1x8x512xf32>
    %136 = vector.shape_cast %135 : vector<1x8x512xf32> to vector<8x512xf32>
    %cst_38 = arith.constant dense<0.000000e+00> : vector<8x512xf32>
    %137 = tpu.matmul %133, %0, %cst_38 {dimension_numbers = #tpu.dot_dimension_numbers<[1], [0], [0], [1], [0, 0, 1, 1], [], []>} : vector<8x128xf32>, vector<128x512xf32>, vector<8x512xf32> -> vector<8x512xf32>
    %138 = arith.addf %136, %137 : vector<8x512xf32>
    %139 = vector.extract_strided_slice %138 {offsets = [0, 0], sizes = [8, 128], strides = [1, 1]} : vector<8x512xf32> to vector<8x128xf32>
    %140 = arith.negf %139 : vector<8x128xf32>
    %141 = math.exp %140 : vector<8x128xf32>
    %cst_39 = arith.constant 1.000000e+00 : f32
    %142 = vector.broadcast %cst_39 : f32 to vector<8x128xf32>
    %143 = arith.addf %142, %141 : vector<8x128xf32>
    %144 = arith.divf %142, %143 : vector<8x128xf32>
    %145 = vector.extract_strided_slice %138 {offsets = [0, 128], sizes = [8, 128], strides = [1, 1]} : vector<8x512xf32> to vector<8x128xf32>
    %146 = arith.negf %145 : vector<8x128xf32>
    %147 = math.exp %146 : vector<8x128xf32>
    %cst_40 = arith.constant 1.000000e+00 : f32
    %148 = vector.broadcast %cst_40 : f32 to vector<8x128xf32>
    %149 = arith.addf %148, %147 : vector<8x128xf32>
    %150 = arith.divf %148, %149 : vector<8x128xf32>
    %151 = vector.extract_strided_slice %138 {offsets = [0, 256], sizes = [8, 128], strides = [1, 1]} : vector<8x512xf32> to vector<8x128xf32>
    %152 = math.tanh %151 : vector<8x128xf32>
    %153 = vector.extract_strided_slice %138 {offsets = [0, 384], sizes = [8, 128], strides = [1, 1]} : vector<8x512xf32> to vector<8x128xf32>
    %154 = arith.negf %153 : vector<8x128xf32>
    %155 = math.exp %154 : vector<8x128xf32>
    %cst_41 = arith.constant 1.000000e+00 : f32
    %156 = vector.broadcast %cst_41 : f32 to vector<8x128xf32>
    %157 = arith.addf %156, %155 : vector<8x128xf32>
    %158 = arith.divf %156, %157 : vector<8x128xf32>
    %159 = arith.mulf %150, %131 : vector<8x128xf32>
    %160 = arith.mulf %144, %152 : vector<8x128xf32>
    %161 = arith.addf %159, %160 : vector<8x128xf32>
    %162 = math.tanh %161 : vector<8x128xf32>
    %163 = arith.mulf %158, %162 : vector<8x128xf32>
    %c5_i32 = arith.constant 5 : i32
    %164 = arith.index_cast %c5_i32 : i32 to index
    %c0_42 = arith.constant 0 : index
    %c0_43 = arith.constant 0 : index
    %165 = vector.load %arg9[%164, %c0_42, %c0_43] : memref<8x8x512xf32, #tpu.memory_space<vmem>>, vector<1x8x512xf32>
    %166 = vector.shape_cast %165 : vector<1x8x512xf32> to vector<8x512xf32>
    %cst_44 = arith.constant dense<0.000000e+00> : vector<8x512xf32>
    %167 = tpu.matmul %163, %0, %cst_44 {dimension_numbers = #tpu.dot_dimension_numbers<[1], [0], [0], [1], [0, 0, 1, 1], [], []>} : vector<8x128xf32>, vector<128x512xf32>, vector<8x512xf32> -> vector<8x512xf32>
    %168 = arith.addf %166, %167 : vector<8x512xf32>
    %169 = vector.extract_strided_slice %168 {offsets = [0, 0], sizes = [8, 128], strides = [1, 1]} : vector<8x512xf32> to vector<8x128xf32>
    %170 = arith.negf %169 : vector<8x128xf32>
    %171 = math.exp %170 : vector<8x128xf32>
    %cst_45 = arith.constant 1.000000e+00 : f32
    %172 = vector.broadcast %cst_45 : f32 to vector<8x128xf32>
    %173 = arith.addf %172, %171 : vector<8x128xf32>
    %174 = arith.divf %172, %173 : vector<8x128xf32>
    %175 = vector.extract_strided_slice %168 {offsets = [0, 128], sizes = [8, 128], strides = [1, 1]} : vector<8x512xf32> to vector<8x128xf32>
    %176 = arith.negf %175 : vector<8x128xf32>
    %177 = math.exp %176 : vector<8x128xf32>
    %cst_46 = arith.constant 1.000000e+00 : f32
    %178 = vector.broadcast %cst_46 : f32 to vector<8x128xf32>
    %179 = arith.addf %178, %177 : vector<8x128xf32>
    %180 = arith.divf %178, %179 : vector<8x128xf32>
    %181 = vector.extract_strided_slice %168 {offsets = [0, 256], sizes = [8, 128], strides = [1, 1]} : vector<8x512xf32> to vector<8x128xf32>
    %182 = math.tanh %181 : vector<8x128xf32>
    %183 = vector.extract_strided_slice %168 {offsets = [0, 384], sizes = [8, 128], strides = [1, 1]} : vector<8x512xf32> to vector<8x128xf32>
    %184 = arith.negf %183 : vector<8x128xf32>
    %185 = math.exp %184 : vector<8x128xf32>
    %cst_47 = arith.constant 1.000000e+00 : f32
    %186 = vector.broadcast %cst_47 : f32 to vector<8x128xf32>
    %187 = arith.addf %186, %185 : vector<8x128xf32>
    %188 = arith.divf %186, %187 : vector<8x128xf32>
    %189 = arith.mulf %180, %161 : vector<8x128xf32>
    %190 = arith.mulf %174, %182 : vector<8x128xf32>
    %191 = arith.addf %189, %190 : vector<8x128xf32>
    %192 = math.tanh %191 : vector<8x128xf32>
    %193 = arith.mulf %188, %192 : vector<8x128xf32>
    %c6_i32 = arith.constant 6 : i32
    %194 = arith.index_cast %c6_i32 : i32 to index
    %c0_48 = arith.constant 0 : index
    %c0_49 = arith.constant 0 : index
    %195 = vector.load %arg9[%194, %c0_48, %c0_49] : memref<8x8x512xf32, #tpu.memory_space<vmem>>, vector<1x8x512xf32>
    %196 = vector.shape_cast %195 : vector<1x8x512xf32> to vector<8x512xf32>
    %cst_50 = arith.constant dense<0.000000e+00> : vector<8x512xf32>
    %197 = tpu.matmul %193, %0, %cst_50 {dimension_numbers = #tpu.dot_dimension_numbers<[1], [0], [0], [1], [0, 0, 1, 1], [], []>} : vector<8x128xf32>, vector<128x512xf32>, vector<8x512xf32> -> vector<8x512xf32>
    %198 = arith.addf %196, %197 : vector<8x512xf32>
    %199 = vector.extract_strided_slice %198 {offsets = [0, 0], sizes = [8, 128], strides = [1, 1]} : vector<8x512xf32> to vector<8x128xf32>
    %200 = arith.negf %199 : vector<8x128xf32>
    %201 = math.exp %200 : vector<8x128xf32>
    %cst_51 = arith.constant 1.000000e+00 : f32
    %202 = vector.broadcast %cst_51 : f32 to vector<8x128xf32>
    %203 = arith.addf %202, %201 : vector<8x128xf32>
    %204 = arith.divf %202, %203 : vector<8x128xf32>
    %205 = vector.extract_strided_slice %198 {offsets = [0, 128], sizes = [8, 128], strides = [1, 1]} : vector<8x512xf32> to vector<8x128xf32>
    %206 = arith.negf %205 : vector<8x128xf32>
    %207 = math.exp %206 : vector<8x128xf32>
    %cst_52 = arith.constant 1.000000e+00 : f32
    %208 = vector.broadcast %cst_52 : f32 to vector<8x128xf32>
    %209 = arith.addf %208, %207 : vector<8x128xf32>
    %210 = arith.divf %208, %209 : vector<8x128xf32>
    %211 = vector.extract_strided_slice %198 {offsets = [0, 256], sizes = [8, 128], strides = [1, 1]} : vector<8x512xf32> to vector<8x128xf32>
    %212 = math.tanh %211 : vector<8x128xf32>
    %213 = vector.extract_strided_slice %198 {offsets = [0, 384], sizes = [8, 128], strides = [1, 1]} : vector<8x512xf32> to vector<8x128xf32>
    %214 = arith.negf %213 : vector<8x128xf32>
    %215 = math.exp %214 : vector<8x128xf32>
    %cst_53 = arith.constant 1.000000e+00 : f32
    %216 = vector.broadcast %cst_53 : f32 to vector<8x128xf32>
    %217 = arith.addf %216, %215 : vector<8x128xf32>
    %218 = arith.divf %216, %217 : vector<8x128xf32>
    %219 = arith.mulf %210, %191 : vector<8x128xf32>
    %220 = arith.mulf %204, %212 : vector<8x128xf32>
    %221 = arith.addf %219, %220 : vector<8x128xf32>
    %222 = math.tanh %221 : vector<8x128xf32>
    %223 = arith.mulf %218, %222 : vector<8x128xf32>
    %c7_i32 = arith.constant 7 : i32
    %224 = arith.index_cast %c7_i32 : i32 to index
    %c0_54 = arith.constant 0 : index
    %c0_55 = arith.constant 0 : index
    %225 = vector.load %arg9[%224, %c0_54, %c0_55] : memref<8x8x512xf32, #tpu.memory_space<vmem>>, vector<1x8x512xf32>
    %226 = vector.shape_cast %225 : vector<1x8x512xf32> to vector<8x512xf32>
    %cst_56 = arith.constant dense<0.000000e+00> : vector<8x512xf32>
    %227 = tpu.matmul %223, %0, %cst_56 {dimension_numbers = #tpu.dot_dimension_numbers<[1], [0], [0], [1], [0, 0, 1, 1], [], []>} : vector<8x128xf32>, vector<128x512xf32>, vector<8x512xf32> -> vector<8x512xf32>
    %228 = arith.addf %226, %227 : vector<8x512xf32>
    %229 = vector.extract_strided_slice %228 {offsets = [0, 0], sizes = [8, 128], strides = [1, 1]} : vector<8x512xf32> to vector<8x128xf32>
    %230 = arith.negf %229 : vector<8x128xf32>
    %231 = math.exp %230 : vector<8x128xf32>
    %cst_57 = arith.constant 1.000000e+00 : f32
    %232 = vector.broadcast %cst_57 : f32 to vector<8x128xf32>
    %233 = arith.addf %232, %231 : vector<8x128xf32>
    %234 = arith.divf %232, %233 : vector<8x128xf32>
    %235 = vector.extract_strided_slice %228 {offsets = [0, 128], sizes = [8, 128], strides = [1, 1]} : vector<8x512xf32> to vector<8x128xf32>
    %236 = arith.negf %235 : vector<8x128xf32>
    %237 = math.exp %236 : vector<8x128xf32>
    %cst_58 = arith.constant 1.000000e+00 : f32
    %238 = vector.broadcast %cst_58 : f32 to vector<8x128xf32>
    %239 = arith.addf %238, %237 : vector<8x128xf32>
    %240 = arith.divf %238, %239 : vector<8x128xf32>
    %241 = vector.extract_strided_slice %228 {offsets = [0, 256], sizes = [8, 128], strides = [1, 1]} : vector<8x512xf32> to vector<8x128xf32>
    %242 = math.tanh %241 : vector<8x128xf32>
    %243 = vector.extract_strided_slice %228 {offsets = [0, 384], sizes = [8, 128], strides = [1, 1]} : vector<8x512xf32> to vector<8x128xf32>
    %244 = arith.negf %243 : vector<8x128xf32>
    %245 = math.exp %244 : vector<8x128xf32>
    %cst_59 = arith.constant 1.000000e+00 : f32
    %246 = vector.broadcast %cst_59 : f32 to vector<8x128xf32>
    %247 = arith.addf %246, %245 : vector<8x128xf32>
    %248 = arith.divf %246, %247 : vector<8x128xf32>
    %249 = arith.mulf %240, %221 : vector<8x128xf32>
    %250 = arith.mulf %234, %242 : vector<8x128xf32>
    %251 = arith.addf %249, %250 : vector<8x128xf32>
    %252 = math.tanh %251 : vector<8x128xf32>
    %253 = arith.mulf %248, %252 : vector<8x128xf32>
    %c8_i32 = arith.constant 8 : i32
    %c0_60 = arith.constant 0 : index
    %c0_61 = arith.constant 0 : index
    %254 = vector.load %arg4[%c0_60, %c0_61] : memref<128x32xf32, #tpu.memory_space<vmem>>, vector<128x32xf32>
    %cst_62 = arith.constant dense<0.000000e+00> : vector<8x32xf32>
    %255 = tpu.matmul %253, %254, %cst_62 {dimension_numbers = #tpu.dot_dimension_numbers<[1], [0], [0], [1], [0, 0, 1, 1], [], []>} : vector<8x128xf32>, vector<128x32xf32>, vector<8x32xf32> -> vector<8x32xf32>
    %c0_63 = arith.constant 0 : index
    %c0_64 = arith.constant 0 : index
    %256 = vector.load %arg5[%c0_63, %c0_64] : memref<1x32xf32, #tpu.memory_space<vmem>>, vector<1x32xf32>
    %257 = vector.broadcast %256 : vector<1x32xf32> to vector<8x32xf32>
    %258 = arith.addf %255, %257 : vector<8x32xf32>
    %cst_65 = arith.constant 0.000000e+00 : f32
    %259 = vector.broadcast %cst_65 : f32 to vector<8x32xf32>
    %260 = arith.maximumf %258, %259 : vector<8x32xf32>
    %c0_66 = arith.constant 0 : index
    %c0_67 = arith.constant 0 : index
    %261 = vector.load %arg6[%c0_66, %c0_67] : memref<32x1xf32, #tpu.memory_space<vmem>>, vector<32x1xf32>
    %262 = vector.shape_cast %261 : vector<32x1xf32> to vector<1x32xf32>
    %263 = vector.broadcast %262 : vector<1x32xf32> to vector<8x32xf32>
    %264 = arith.mulf %260, %263 : vector<8x32xf32>
    %cst_68 = arith.constant dense<0.000000e+00> : vector<8xf32>
    %265 = vector.multi_reduction <add>, %264, %cst_68 [1] : vector<8x32xf32> to vector<8xf32>
    %266 = vector.shape_cast %265 : vector<8xf32> to vector<8x1xf32>
    %c0_69 = arith.constant 0 : index
    %c0_70 = arith.constant 0 : index
    %267 = vector.load %arg7[%c0_69, %c0_70] : memref<1x1xf32, #tpu.memory_space<vmem>>, vector<1x1xf32>
    %268 = vector.broadcast %267 : vector<1x1xf32> to vector<8x1xf32>
    %269 = arith.addf %266, %268 : vector<8x1xf32>
    %c0_71 = arith.constant 0 : index
    %c0_72 = arith.constant 0 : index
    %270 = vector.load %arg8[%c0_71, %c0_72] : memref<8x1xf32, #tpu.memory_space<vmem>>, vector<8x1xf32>
    tpu.vector_store %arg8[%c0_71, %c0_72], %269 {strides = array<i32>} : memref<8x1xf32, #tpu.memory_space<vmem>>, vector<8x1xf32>,
    return
  }
}

</mosaic_0001>

<llo_original>
// kernel: tpu_custom_call.1
$region0: #{tpu_custom_call.1}
  #allocation0 [shape = 'u32[]', space=smem, size = 0x4, offset = 0x4, fixed_abs, tag = 'smem constant byte address 0x4 - core index']
  #allocation1 [shape = 'u32[144,128]{1,0:T(1,128)}', space=vmem, size = 0x12000, scoped, tag = 'internal scratch']
  #allocation2 [shape = 'f32[8,8,512]{2,1,0:T(8,128)}', space=vmem, size = 0x20000, scoped, tag = 'scratch operand']
  #allocation3 [shape = 'f32[1,1]{1,0:T(1,128)S(1)}', space=vmem, size = 0x200, scoped, tag = 'scoped memory for tpu_custom_call.1']
  %s0 = inlined_call_operand.vmem [shape: f32[8,8,1], index: 0, kind: input, shape index: {}]
  %s1 = inlined_call_operand.vmem [shape: f32[1,512], index: 1, kind: input, shape index: {}]
  %s2 = inlined_call_operand.hbm [shape: f32[128,512], index: 2, kind: input, shape index: {}]
  %s3 = inlined_call_operand.vmem [shape: f32[1,512], index: 3, kind: input, shape index: {}]
  %s4 = inlined_call_operand.vmem [shape: f32[128,32], index: 4, kind: input, shape index: {}]
  %s5 = inlined_call_operand.vmem [shape: f32[1,32], index: 5, kind: input, shape index: {}]
  %s6 = inlined_call_operand.vmem [shape: f32[32,1], index: 6, kind: input, shape index: {}]
  %s7 = inlined_call_operand.<no memory space> [shape: f32[1,1], index: 7, kind: input, shape index: {}]
  %s8 = inlined_call_operand.vmem [shape: f32[8,1], index: 8, kind: output, shape index: {}]
  %s9 = sld [smem:[#allocation0]]
  $region46: #{tpu_custom_call.1} parent=0
    _
  %s11 = ssub.s32 1, %s9
  %s12 = scalar_select 0, %s11, %s9
  %v13 = vstv %s7
  %14 = vst [vmem:[#allocation3] sm:$0x1] %v13
  $region1: #{tpu_custom_call.1} parent=0
    #allocation4 [shape = 'u8[262144]{0}', space=vmem, size = 0x40000, scoped, tag = 'input window, operand 2, single buffered']
    #allocation5 [shape = 's32[1]{0}', space=sflag, size = 0x4, scoped, tag = 'scoped memory for tpu_custom_call.1']
    %15 = vsyncpa [#allocation5], 0
    // Predicated region
    $region2: #{tpu_custom_call.1} parent=1 // pred_check
      _
    $region3: #{tpu_custom_call.1} parent=1 // pred_check_branch
      %17 = sbr.rel (0) target = $region5
    $region4: #{tpu_custom_call.1} parent=1 // pred_region
      _
    $region5: #{tpu_custom_call.1} parent=1 // pred_fallthru
      _
    // Predicated region
    $region6: #{tpu_custom_call.1} parent=1 // pred_check
      _
    $region7: #{tpu_custom_call.1} parent=1 // pred_check_branch
      %19 = sbr.rel (0) target = $region9
    $region8: #{tpu_custom_call.1} parent=1 // pred_region
      _
    $region9: #{tpu_custom_call.1} parent=1 // pred_fallthru
      _
    // Predicated region
    $region10: #{tpu_custom_call.1} parent=1 // pred_check
      _
    $region11: #{tpu_custom_call.1} parent=1 // pred_check_branch
      %21 = sbr.rel (0) target = $region13
    $region12: #{tpu_custom_call.1} parent=1 // pred_region
      %s23 = ssub.s32 8192, 8192
      %24 = vsyncadd [#allocation5], %s23
      %s25 = sshll.u32 [#allocation4], 4
      %s26 = int_to_ptr.vmem [resolvable:$true] %s25
      %31 = dma.hbm_to_vmem [thread:$0]  %s2, 8192, %s26, [#allocation5], 512, 512, 32
    $region13: #{tpu_custom_call.1} parent=1 // pred_fallthru
      _
    // Predicated region
    $region14: #{tpu_custom_call.1} parent=1 // pred_check
      _
    $region15: #{tpu_custom_call.1} parent=1 // pred_check_branch
      %33 = sbr.rel (0) target = $region17
    $region16: #{tpu_custom_call.1} parent=1 // pred_region
      _
    $region17: #{tpu_custom_call.1} parent=1 // pred_fallthru
      _
    // Predicated region
    $region18: #{tpu_custom_call.1} parent=1 // pred_check
      _
    $region19: #{tpu_custom_call.1} parent=1 // pred_check_branch
      %35 = sbr.rel (0) target = $region21
    $region20: #{tpu_custom_call.1} parent=1 // pred_region
      _
    $region21: #{tpu_custom_call.1} parent=1 // pred_fallthru
      _
    // Predicated region
    $region22: #{tpu_custom_call.1} parent=1 // pred_check
      _
    $region23: #{tpu_custom_call.1} parent=1 // pred_check_branch
      %37 = sbr.rel (0) target = $region25
    $region24: #{tpu_custom_call.1} parent=1 // pred_region
      _
    $region25: #{tpu_custom_call.1} parent=1 // pred_fallthru
      _
    // Predicated region
    $region26: #{tpu_custom_call.1} parent=1 // pred_check
      _
    $region27: #{tpu_custom_call.1} parent=1 // pred_check_branch
      %39 = sbr.rel (0) target = $region29
    $region28: #{tpu_custom_call.1} parent=1 // pred_region
      _
    $region29: #{tpu_custom_call.1} parent=1 // pred_fallthru
      _
    // Predicated region
    $region30: #{tpu_custom_call.1} parent=1 // pred_check
      _
    $region31: #{tpu_custom_call.1} parent=1 // pred_check_branch
      %41 = sbr.rel (0) target = $region33
    $region32: #{tpu_custom_call.1} parent=1 // pred_region
      _
    $region33: #{tpu_custom_call.1} parent=1 // pred_fallthru
      _
    // Predicated region
    $region34: #{tpu_custom_call.1} parent=1 // pred_check
      _
    $region35: #{tpu_custom_call.1} parent=1 // pred_check_branch
      %43 = sbr.rel (0) target = $region37
    $region36: #{tpu_custom_call.1} parent=1 // pred_region
      %44 = dma.done [#allocation5], 8192
    $region37: #{tpu_custom_call.1} parent=1 // pred_fallthru
      _
    %v45 = vld [vmem:[#allocation4] sm:$0xff]
    %v46 = vld [vmem:[#allocation4 + $0x8] sm:$0xff]
    %v47 = vld [vmem:[#allocation4 + $0x10] sm:$0xff]
    %v48 = vld [vmem:[#allocation4 + $0x18] sm:$0xff]
    %v49 = vld [vmem:[#allocation4 + $0x20] sm:$0xff]
    %v50 = vld [vmem:[#allocation4 + $0x28] sm:$0xff]
    %v51 = vld [vmem:[#allocation4 + $0x30] sm:$0xff]
    %v52 = vld [vmem:[#allocation4 + $0x38] sm:$0xff]
    %v53 = vld [vmem:[#allocation4 + $0x40] sm:$0xff]
    %v54 = vld [vmem:[#allocation4 + $0x48] sm:$0xff]
    %v55 = vld [vmem:[#allocation4 + $0x50] sm:$0xff]
    %v56 = vld [vmem:[#allocation4 + $0x58] sm:$0xff]
    %v57 = vld [vmem:[#allocation4 + $0x60] sm:$0xff]
    %v58 = vld [vmem:[#allocation4 + $0x68] sm:$0xff]
    %v59 = vld [vmem:[#allocation4 + $0x70] sm:$0xff]
    %v60 = vld [vmem:[#allocation4 + $0x78] sm:$0xff]
    %v61 = vld [vmem:[#allocation4 + $0x80] sm:$0xff]
    %v62 = vld [vmem:[#allocation4 + $0x88] sm:$0xff]
    %v63 = vld [vmem:[#allocation4 + $0x90] sm:$0xff]
    %v64 = vld [vmem:[#allocation4 + $0x98] sm:$0xff]
    %v65 = vld [vmem:[#allocation4 + $0xa0] sm:$0xff]
    %v66 = vld [vmem:[#allocation4 + $0xa8] sm:$0xff]
    %v67 = vld [vmem:[#allocation4 + $0xb0] sm:$0xff]
    %v68 = vld [vmem:[#allocation4 + $0xb8] sm:$0xff]
    %v69 = vld [vmem:[#allocation4 + $0xc0] sm:$0xff]
    %v70 = vld [vmem:[#allocation4 + $0xc8] sm:$0xff]
    %v71 = vld [vmem:[#allocation4 + $0xd0] sm:$0xff]
    %v72 = vld [vmem:[#allocation4 + $0xd8] sm:$0xff]
    %v73 = vld [vmem:[#allocation4 + $0xe0] sm:$0xff]
    %v74 = vld [vmem:[#allocation4 + $0xe8] sm:$0xff]
    %v75 = vld [vmem:[#allocation4 + $0xf0] sm:$0xff]
    %v76 = vld [vmem:[#allocation4 + $0xf8] sm:$0xff]
    %v77 = vld [vmem:[#allocation4 + $0x100] sm:$0xff]
    %v78 = vld [vmem:[#allocation4 + $0x108] sm:$0xff]
    %v79 = vld [vmem:[#allocation4 + $0x110] sm:$0xff]
    %v80 = vld [vmem:[#allocation4 + $0x118] sm:$0xff]
    %v81 = vld [vmem:[#allocation4 + $0x120] sm:$0xff]
    %v82 = vld [vmem:[#allocation4 + $0x128] sm:$0xff]
    %v83 = vld [vmem:[#allocation4 + $0x130] sm:$0xff]
    %v84 = vld [vmem:[#allocation4 + $0x138] sm:$0xff]
    %v85 = vld [vmem:[#allocation4 + $0x140] sm:$0xff]
    %v86 = vld [vmem:[#allocation4 + $0x148] sm:$0xff]
    %v87 = vld [vmem:[#allocation4 + $0x150] sm:$0xff]
    %v88 = vld [vmem:[#allocation4 + $0x158] sm:$0xff]
    %v89 = vld [vmem:[#allocation4 + $0x160] sm:$0xff]
    %v90 = vld [vmem:[#allocation4 + $0x168] sm:$0xff]
    %v91 = vld [vmem:[#allocation4 + $0x170] sm:$0xff]
    %v92 = vld [vmem:[#allocation4 + $0x178] sm:$0xff]
    %v93 = vld [vmem:[#allocation4 + $0x180] sm:$0xff]
    %v94 = vld [vmem:[#allocation4 + $0x188] sm:$0xff]
    %v95 = vld [vmem:[#allocation4 + $0x190] sm:$0xff]
    %v96 = vld [vmem:[#allocation4 + $0x198] sm:$0xff]
    %v97 = vld [vmem:[#allocation4 + $0x1a0] sm:$0xff]
    %v98 = vld [vmem:[#allocation4 + $0x1a8] sm:$0xff]
    %v99 = vld [vmem:[#allocation4 + $0x1b0] sm:$0xff]
    %v100 = vld [vmem:[#allocation4 + $0x1b8] sm:$0xff]
    %v101 = vld [vmem:[#allocation4 + $0x1c0] sm:$0xff]
    %v102 = vld [vmem:[#allocation4 + $0x1c8] sm:$0xff]
    %v103 = vld [vmem:[#allocation4 + $0x1d0] sm:$0xff]
    %v104 = vld [vmem:[#allocation4 + $0x1d8] sm:$0xff]
    %v105 = vld [vmem:[#allocation4 + $0x1e0] sm:$0xff]
    %v106 = vld [vmem:[#allocation4 + $0x1e8] sm:$0xff]
    %v107 = vld [vmem:[#allocation4 + $0x1f0] sm:$0xff]
    %v108 = vld [vmem:[#allocation4 + $0x1f8] sm:$0xff]
    %v109 = vld [vmem:[%s3] sm:$0xf]
    %v110 = vld [vmem:[%s0] sm:$0xff]
    %v111 = vld [vmem:[%s0 + $0x8] sm:$0xff]
    %v112 = vld [vmem:[%s0 + $0x10] sm:$0xff]
    %v113 = vld [vmem:[%s0 + $0x18] sm:$0xff]
    %v114 = vld [vmem:[%s0 + $0x20] sm:$0xff]
    %v115 = vld [vmem:[%s0 + $0x28] sm:$0xff]
    %v116 = vld [vmem:[%s0 + $0x30] sm:$0xff]
    %v117 = vld [vmem:[%s0 + $0x38] sm:$0xff]
    %v118 = vld [vmem:[%s1] sm:$0xf]
    %120 = vset.pattern.permute.xlu0 0
    %121 = vperm.xlu0 %120, %v110
    %v122 = vpop.permute.xlu0 %121
    %125 = vset.pattern.permute.xlu0 0
    %126 = vperm.xlu0 %125, %v111
    %v127 = vpop.permute.xlu0 %126
    %130 = vset.pattern.permute.xlu0 0
    %131 = vperm.xlu0 %130, %v112
    %v132 = vpop.permute.xlu0 %131
    %135 = vset.pattern.permute.xlu0 0
    %136 = vperm.xlu0 %135, %v113
    %v137 = vpop.permute.xlu0 %136
    %140 = vset.pattern.permute.xlu0 0
    %141 = vperm.xlu0 %140, %v114
    %v142 = vpop.permute.xlu0 %141
    %145 = vset.pattern.permute.xlu0 0
    %146 = vperm.xlu0 %145, %v115
    %v147 = vpop.permute.xlu0 %146
    %150 = vset.pattern.permute.xlu0 0
    %151 = vperm.xlu0 %150, %v116
    %v152 = vpop.permute.xlu0 %151
    %155 = vset.pattern.permute.xlu0 0
    %156 = vperm.xlu0 %155, %v117
    %v157 = vpop.permute.xlu0 %156
    %v160 = vlaneseq
    %v161 = vshrl.u32 %v160, 7
    %v162 = vsub.s32 0, %v161
    %v163 = vrot.slane %v118, %v162
    %v164 = vlaneseq
    %v165 = vshrl.u32 %v164, 7
    %v166 = vsub.s32 1, %v165
    %v167 = vrot.slane %v118, %v166
    %v168 = vlaneseq
    %v169 = vshrl.u32 %v168, 7
    %v170 = vsub.s32 2, %v169
    %v171 = vrot.slane %v118, %v170
    %v172 = vlaneseq
    %v173 = vshrl.u32 %v172, 7
    %v174 = vsub.s32 3, %v173
    %v175 = vrot.slane %v118, %v174
    %v180 = vmul.f32 %v122, %v163
    %v181 = vmul.f32 %v122, %v167
    %v182 = vmul.f32 %v122, %v171
    %v183 = vmul.f32 %v122, %v175
    %v184 = vmul.f32 %v127, %v163
    %v185 = vmul.f32 %v127, %v167
    %v186 = vmul.f32 %v127, %v171
    %v187 = vmul.f32 %v127, %v175
    %v188 = vmul.f32 %v132, %v163
    %v189 = vmul.f32 %v132, %v167
    %v190 = vmul.f32 %v132, %v171
    %v191 = vmul.f32 %v132, %v175
    %v192 = vmul.f32 %v137, %v163
    %v193 = vmul.f32 %v137, %v167
    %v194 = vmul.f32 %v137, %v171
    %v195 = vmul.f32 %v137, %v175
    %v196 = vmul.f32 %v142, %v163
    %v197 = vmul.f32 %v142, %v167
    %v198 = vmul.f32 %v142, %v171
    %v199 = vmul.f32 %v142, %v175
    %v200 = vmul.f32 %v147, %v163
    %v201 = vmul.f32 %v147, %v167
    %v202 = vmul.f32 %v147, %v171
    %v203 = vmul.f32 %v147, %v175
    %v204 = vmul.f32 %v152, %v163
    %v205 = vmul.f32 %v152, %v167
    %v206 = vmul.f32 %v152, %v171
    %v207 = vmul.f32 %v152, %v175
    %v208 = vmul.f32 %v157, %v163
    %v209 = vmul.f32 %v157, %v167
    %v210 = vmul.f32 %v157, %v171
    %v211 = vmul.f32 %v157, %v175
    %v213 = vlaneseq
    %v214 = vshrl.u32 %v213, 7
    %v215 = vsub.s32 0, %v214
    %v216 = vrot.slane %v109, %v215
    %v217 = vlaneseq
    %v218 = vshrl.u32 %v217, 7
    %v219 = vsub.s32 1, %v218
    %v220 = vrot.slane %v109, %v219
    %v221 = vlaneseq
    %v222 = vshrl.u32 %v221, 7
    %v223 = vsub.s32 2, %v222
    %v224 = vrot.slane %v109, %v223
    %v225 = vlaneseq
    %v226 = vshrl.u32 %v225, 7
    %v227 = vsub.s32 3, %v226
    %v228 = vrot.slane %v109, %v227
    %v233 = vadd.f32 %v180, %v216
    %v234 = vadd.f32 %v181, %v220
    %v235 = vadd.f32 %v182, %v224
    %v236 = vadd.f32 %v183, %v228
    %v237 = vadd.f32 %v184, %v216
    %v238 = vadd.f32 %v185, %v220
    %v239 = vadd.f32 %v186, %v224
    %v240 = vadd.f32 %v187, %v228
    %v241 = vadd.f32 %v188, %v216
    %v242 = vadd.f32 %v189, %v220
    %v243 = vadd.f32 %v190, %v224
    %v244 = vadd.f32 %v191, %v228
    %v245 = vadd.f32 %v192, %v216
    %v246 = vadd.f32 %v193, %v220
    %v247 = vadd.f32 %v194, %v224
    %v248 = vadd.f32 %v195, %v228
    %v249 = vadd.f32 %v196, %v216
    %v250 = vadd.f32 %v197, %v220
    %v251 = vadd.f32 %v198, %v224
    %v252 = vadd.f32 %v199, %v228
    %v253 = vadd.f32 %v200, %v216
    %v254 = vadd.f32 %v201, %v220
    %v255 = vadd.f32 %v202, %v224
    %v256 = vadd.f32 %v203, %v228
    %v257 = vadd.f32 %v204, %v216
    %v258 = vadd.f32 %v205, %v220
    %v259 = vadd.f32 %v206, %v224
    %v260 = vadd.f32 %v207, %v228
    %v261 = vadd.f32 %v208, %v216
    %v262 = vadd.f32 %v209, %v220
    %v263 = vadd.f32 %v210, %v224
    %v264 = vadd.f32 %v211, %v228
    %265 = vst [vmem:[#allocation2] sm:$0xff] %v233
    %266 = vst [vmem:[#allocation2 + $0x8] sm:$0xff] %v234
    %267 = vst [vmem:[#allocation2 + $0x10] sm:$0xff] %v235
    %268 = vst [vmem:[#allocation2 + $0x18] sm:$0xff] %v236
    %269 = vst [vmem:[#allocation2 + $0x20] sm:$0xff] %v237
    %270 = vst [vmem:[#allocation2 + $0x28] sm:$0xff] %v238
    %271 = vst [vmem:[#allocation2 + $0x30] sm:$0xff] %v239
    %272 = vst [vmem:[#allocation2 + $0x38] sm:$0xff] %v240
    %273 = vst [vmem:[#allocation2 + $0x40] sm:$0xff] %v241
    %274 = vst [vmem:[#allocation2 + $0x48] sm:$0xff] %v242
    %275 = vst [vmem:[#allocation2 + $0x50] sm:$0xff] %v243
    %276 = vst [vmem:[#allocation2 + $0x58] sm:$0xff] %v244
    %277 = vst [vmem:[#allocation2 + $0x60] sm:$0xff] %v245
    %278 = vst [vmem:[#allocation2 + $0x68] sm:$0xff] %v246
    %279 = vst [vmem:[#allocation2 + $0x70] sm:$0xff] %v247
    %280 = vst [vmem:[#allocation2 + $0x78] sm:$0xff] %v248
    %281 = vst [vmem:[#allocation2 + $0x80] sm:$0xff] %v249
    %282 = vst [vmem:[#allocation2 + $0x88] sm:$0xff] %v250
    %283 = vst [vmem:[#allocation2 + $0x90] sm:$0xff] %v251
    %284 = vst [vmem:[#allocation2 + $0x98] sm:$0xff] %v252
    %285 = vst [vmem:[#allocation2 + $0xa0] sm:$0xff] %v253
    %286 = vst [vmem:[#allocation2 + $0xa8] sm:$0xff] %v254
    %287 = vst [vmem:[#allocation2 + $0xb0] sm:$0xff] %v255
    %288 = vst [vmem:[#allocation2 + $0xb8] sm:$0xff] %v256
    %289 = vst [vmem:[#allocation2 + $0xc0] sm:$0xff] %v257
    %290 = vst [vmem:[#allocation2 + $0xc8] sm:$0xff] %v258
    %291 = vst [vmem:[#allocation2 + $0xd0] sm:$0xff] %v259
    %292 = vst [vmem:[#allocation2 + $0xd8] sm:$0xff] %v260
    %293 = vst [vmem:[#allocation2 + $0xe0] sm:$0xff] %v261
    %294 = vst [vmem:[#allocation2 + $0xe8] sm:$0xff] %v262
    %295 = vst [vmem:[#allocation2 + $0xf0] sm:$0xff] %v263
    %296 = vst [vmem:[#allocation2 + $0xf8] sm:$0xff] %v264
    %v297 = vld [vmem:[#allocation2] sm:$0xff]
    %v298 = vld [vmem:[#allocation2 + $0x8] sm:$0xff]
    %v299 = vld [vmem:[#allocation2 + $0x10] sm:$0xff]
    %v300 = vld [vmem:[#allocation2 + $0x18] sm:$0xff]
    %301 = vmatprep.subr.mxu0 %v46
    %302 = vmatpush1.msra.mxu0 %v45
    %303 = vmatprep.subr.mxu0 %v50
    %304 = vmatpush1.msra.mxu0 %v49
    %305 = vmatprep.subr.mxu0 %v54
    %306 = vmatpush1.msra.mxu0 %v53
    %307 = vmatprep.subr.mxu0 %v58
    %308 = vmatpush1.msra.mxu0 %v57
    %309 = vmatprep.subr.mxu0 %v62
    %310 = vmatpush1.msra.mxu0 %v61
    %311 = vmatprep.subr.mxu0 %v66
    %312 = vmatpush1.msra.mxu0 %v65
    %313 = vmatprep.subr.mxu0 %v70
    %314 = vmatpush1.msra.mxu0 %v69
    %315 = vmatprep.subr.mxu0 %v74
    %316 = vmatpush1.msra.mxu0 %v73
    %317 = vmatprep.subr.mxu0 %v78
    %318 = vmatpush1.msra.mxu0 %v77
    %319 = vmatprep.subr.mxu0 %v82
    %320 = vmatpush1.msra.mxu0 %v81
    %321 = vmatprep.subr.mxu0 %v86
    %322 = vmatpush1.msra.mxu0 %v85
    %323 = vmatprep.subr.mxu0 %v90
    %324 = vmatpush1.msra.mxu0 %v89
    %325 = vmatprep.subr.mxu0 %v94
    %326 = vmatpush1.msra.mxu0 %v93
    %327 = vmatprep.subr.mxu0 %v98
    %328 = vmatpush1.msra.mxu0 %v97
    %329 = vmatprep.subr.mxu0 %v102
    %330 = vmatpush1.msra.mxu0 %v101
    %331 = vmatprep.subr.mxu0 %v106
    %332 = vmatpush1.msra.mxu0 %v105
    %333 = vmatprep.subr.mxu0 0.0
    %334 = vmatpush1.msra.mxu0 0.0
    %335 = vmatprep.subr.mxu0 0.0
    %336 = vmatpush1.msra.mxu0 0.0
    %337 = vmatprep.subr.mxu0 0.0
    %338 = vmatpush1.msra.mxu0 0.0
    %339 = vmatprep.subr.mxu0 0.0
    %340 = vmatpush1.msra.mxu0 0.0
    %341 = vmatprep.subr.mxu0 0.0
    %342 = vmatpush1.msra.mxu0 0.0
    %343 = vmatprep.subr.mxu0 0.0
    %344 = vmatpush1.msra.mxu0 0.0
    %345 = vmatprep.subr.mxu0 0.0
    %346 = vmatpush1.msra.mxu0 0.0
    %347 = vmatprep.subr.mxu0 0.0
    %348 = vmatpush1.msra.mxu0 0.0
    %349 = vmatprep.subr.mxu0 0.0
    %350 = vmatpush1.msra.mxu0 0.0
    %351 = vmatprep.subr.mxu0 0.0
    %352 = vmatpush1.msra.mxu0 0.0
    %353 = vmatprep.subr.mxu0 0.0
    %354 = vmatpush1.msra.mxu0 0.0
    %355 = vmatprep.subr.mxu0 0.0
    %356 = vmatpush1.msra.mxu0 0.0
    %357 = vmatprep.subr.mxu0 0.0
    %358 = vmatpush1.msra.mxu0 0.0
    %359 = vmatprep.subr.mxu0 0.0
    %360 = vmatpush1.msra.mxu0 0.0
    %361 = vmatprep.subr.mxu0 0.0
    %362 = vmatpush1.msra.mxu0 0.0
    %363 = vmatprep.subr.mxu0 0.0
    %364 = vmatpush1.msra.mxu0 0.0
    %365 = vmatprep.mubr.f32.mxu0 0.0
    %366 = vmatmul.mubr.f32.gmra.mrb[0].mxu0 0.0
    %v367 = vpop.f32.mrb[0].mxu0
    %v368 = vadd.f32 0.0, %v367
    %v369 = vpop.f32.mrb[0].mxu0
    %v370 = vadd.f32 0.0, %v369
    %371 = vdwg.mxu0
    %372 = vmatprep.subr.mxu0 %v48
    %373 = vmatpush1.msra.mxu0 %v47
    %374 = vmatprep.subr.mxu0 %v52
    %375 = vmatpush1.msra.mxu0 %v51
    %376 = vmatprep.subr.mxu0 %v56
    %377 = vmatpush1.msra.mxu0 %v55
    %378 = vmatprep.subr.mxu0 %v60
    %379 = vmatpush1.msra.mxu0 %v59
    %380 = vmatprep.subr.mxu0 %v64
    %381 = vmatpush1.msra.mxu0 %v63
    %382 = vmatprep.subr.mxu0 %v68
    %383 = vmatpush1.msra.mxu0 %v67
    %384 = vmatprep.subr.mxu0 %v72
    %385 = vmatpush1.msra.mxu0 %v71
    %386 = vmatprep.subr.mxu0 %v76
    %387 = vmatpush1.msra.mxu0 %v75
    %388 = vmatprep.subr.mxu0 %v80
    %389 = vmatpush1.msra.mxu0 %v79
    %390 = vmatprep.subr.mxu0 %v84
    %391 = vmatpush1.msra.mxu0 %v83
    %392 = vmatprep.subr.mxu0 %v88
    %393 = vmatpush1.msra.mxu0 %v87
    %394 = vmatprep.subr.mxu0 %v92
    %395 = vmatpush1.msra.mxu0 %v91
    %396 = vmatprep.subr.mxu0 %v96
    %397 = vmatpush1.msra.mxu0 %v95
    %398 = vmatprep.subr.mxu0 %v100
    %399 = vmatpush1.msra.mxu0 %v99
    %400 = vmatprep.subr.mxu0 %v104
    %401 = vmatpush1.msra.mxu0 %v103
    %402 = vmatprep.subr.mxu0 %v108
    %403 = vmatpush1.msra.mxu0 %v107
    %404 = vmatprep.subr.mxu0 0.0
    %405 = vmatpush1.msra.mxu0 0.0
    %406 = vmatprep.subr.mxu0 0.0
    %407 = vmatpush1.msra.mxu0 0.0
    %408 = vmatprep.subr.mxu0 0.0
    %409 = vmatpush1.msra.mxu0 0.0
    %410 = vmatprep.subr.mxu0 0.0
    %411 = vmatpush1.msra.mxu0 0.0
    %412 = vmatprep.subr.mxu0 0.0
    %413 = vmatpush1.msra.mxu0 0.0
    %414 = vmatprep.subr.mxu0 0.0
    %415 = vmatpush1.msra.mxu0 0.0
    %416 = vmatprep.subr.mxu0 0.0
    %417 = vmatpush1.msra.mxu0 0.0
    %418 = vmatprep.subr.mxu0 0.0
    %419 = vmatpush1.msra.mxu0 0.0
    %420 = vmatprep.subr.mxu0 0.0
    %421 = vmatpush1.msra.mxu0 0.0
    %422 = vmatprep.subr.mxu0 0.0
    %423 = vmatpush1.msra.mxu0 0.0
    %424 = vmatprep.subr.mxu0 0.0
    %425 = vmatpush1.msra.mxu0 0.0
    %426 = vmatprep.subr.mxu0 0.0
    %427 = vmatpush1.msra.mxu0 0.0
    %428 = vmatprep.subr.mxu0 0.0
    %429 = vmatpush1.msra.mxu0 0.0
    %430 = vmatprep.subr.mxu0 0.0
    %431 = vmatpush1.msra.mxu0 0.0
    %432 = vmatprep.subr.mxu0 0.0
    %433 = vmatpush1.msra.mxu0 0.0
    %434 = vmatprep.subr.mxu0 0.0
    %435 = vmatpush1.msra.mxu0 0.0
    %436 = vmatprep.mubr.f32.mxu0 0.0
    %437 = vmatmul.mubr.f32.gmra.mrb[0].mxu0 0.0
    %v438 = vpop.f32.mrb[0].mxu0
    %v439 = vadd.f32 0.0, %v438
    %v440 = vpop.f32.mrb[0].mxu0
    %v441 = vadd.f32 0.0, %v440
    %442 = vdwg.mxu0
    %v443 = vadd.f32 %v297, %v368
    %v444 = vadd.f32 %v298, %v370
    %v445 = vadd.f32 %v299, %v439
    %v446 = vadd.f32 %v300, %v441
    %v447 = vxor.u32 %v443, 2147483648
    %v448 = vmul.f32 %v447, 1.442695
    %v449 = vpow.pop %v448
    %v450 = vadd.f32 %v449, 1.0
    %v451 = vrcp.pop %v450
    %v452 = vmul.f32 1.0, %v451
    %v453 = vxor.u32 %v444, 2147483648
    %v454 = vmul.f32 %v453, 1.442695
    %v455 = vpow.pop %v454
    %v456 = vadd.f32 %v455, 1.0
    %v457 = vrcp.pop %v456
    %v458 = vmul.f32 1.0, %v457
    %v459 = vtanh.pop %v445
    %v460 = vxor.u32 %v446, 2147483648
    %v461 = vmul.f32 %v460, 1.442695
    %v462 = vpow.pop %v461
    %v463 = vadd.f32 %v462, 1.0
    %v464 = vrcp.pop %v463
    %v465 = vmul.f32 1.0, %v464
    %v466 = vmul.f32 %v458, 0.0
    %v467 = vmul.f32 %v452, %v459
    %v468 = vadd.f32 %v466, %v467
    %v469 = vtanh.pop %v468
    %v470 = vmul.f32 %v465, %v469
    %s471 = scalar_lea.vmem [#allocation2], 32
    %v472 = vld [vmem:[%s471] sm:$0xff]
    %v473 = vld [vmem:[%s471 + $0x8] sm:$0xff]
    %v474 = vld [vmem:[%s471 + $0x10] sm:$0xff]
    %v475 = vld [vmem:[%s471 + $0x18] sm:$0xff]
    %476 = vmatprep.subr.mxu0 %v46
    %477 = vmatpush1.msra.mxu0 %v45
    %478 = vmatprep.subr.mxu0 %v50
    %479 = vmatpush1.msra.mxu0 %v49
    %480 = vmatprep.subr.mxu0 %v54
    %481 = vmatpush1.msra.mxu0 %v53
    %482 = vmatprep.subr.mxu0 %v58
    %483 = vmatpush1.msra.mxu0 %v57
    %484 = vmatprep.subr.mxu0 %v62
    %485 = vmatpush1.msra.mxu0 %v61
    %486 = vmatprep.subr.mxu0 %v66
    %487 = vmatpush1.msra.mxu0 %v65
    %488 = vmatprep.subr.mxu0 %v70
    %489 = vmatpush1.msra.mxu0 %v69
    %490 = vmatprep.subr.mxu0 %v74
    %491 = vmatpush1.msra.mxu0 %v73
    %492 = vmatprep.subr.mxu0 %v78
    %493 = vmatpush1.msra.mxu0 %v77
    %494 = vmatprep.subr.mxu0 %v82
    %495 = vmatpush1.msra.mxu0 %v81
    %496 = vmatprep.subr.mxu0 %v86
    %497 = vmatpush1.msra.mxu0 %v85
    %498 = vmatprep.subr.mxu0 %v90
    %499 = vmatpush1.msra.mxu0 %v89
    %500 = vmatprep.subr.mxu0 %v94
    %501 = vmatpush1.msra.mxu0 %v93
    %502 = vmatprep.subr.mxu0 %v98
    %503 = vmatpush1.msra.mxu0 %v97
    %504 = vmatprep.subr.mxu0 %v102
    %505 = vmatpush1.msra.mxu0 %v101
    %506 = vmatprep.subr.mxu0 %v106
    %507 = vmatpush1.msra.mxu0 %v105
    %508 = vmatprep.subr.mxu0 0.0
    %509 = vmatpush1.msra.mxu0 0.0
    %510 = vmatprep.subr.mxu0 0.0
    %511 = vmatpush1.msra.mxu0 0.0
    %512 = vmatprep.subr.mxu0 0.0
    %513 = vmatpush1.msra.mxu0 0.0
    %514 = vmatprep.subr.mxu0 0.0
    %515 = vmatpush1.msra.mxu0 0.0
    %516 = vmatprep.subr.mxu0 0.0
    %517 = vmatpush1.msra.mxu0 0.0
    %518 = vmatprep.subr.mxu0 0.0
    %519 = vmatpush1.msra.mxu0 0.0
    %520 = vmatprep.subr.mxu0 0.0
    %521 = vmatpush1.msra.mxu0 0.0
    %522 = vmatprep.subr.mxu0 0.0
    %523 = vmatpush1.msra.mxu0 0.0
    %524 = vmatprep.subr.mxu0 0.0
    %525 = vmatpush1.msra.mxu0 0.0
    %526 = vmatprep.subr.mxu0 0.0
    %527 = vmatpush1.msra.mxu0 0.0
    %528 = vmatprep.subr.mxu0 0.0
    %529 = vmatpush1.msra.mxu0 0.0
    %530 = vmatprep.subr.mxu0 0.0
    %531 = vmatpush1.msra.mxu0 0.0
    %532 = vmatprep.subr.mxu0 0.0
    %533 = vmatpush1.msra.mxu0 0.0
    %534 = vmatprep.subr.mxu0 0.0
    %535 = vmatpush1.msra.mxu0 0.0
    %536 = vmatprep.subr.mxu0 0.0
    %537 = vmatpush1.msra.mxu0 0.0
    %538 = vmatprep.subr.mxu0 0.0
    %539 = vmatpush1.msra.mxu0 0.0
    %540 = vmatprep.mubr.f32.mxu0 0.0
    %541 = vmatmul.mubr.f32.gmra.mrb[0].mxu0 %v470
    %v542 = vpop.f32.mrb[0].mxu0
    %v543 = vadd.f32 0.0, %v542
    %v544 = vpop.f32.mrb[0].mxu0
    %v545 = vadd.f32 0.0, %v544
    %546 = vdwg.mxu0
    %547 = vmatprep.subr.mxu0 %v48
    %548 = vmatpush1.msra.mxu0 %v47
    %549 = vmatprep.subr.mxu0 %v52
    %550 = vmatpush1.msra.mxu0 %v51
    %551 = vmatprep.subr.mxu0 %v56
    %552 = vmatpush1.msra.mxu0 %v55
    %553 = vmatprep.subr.mxu0 %v60
    %554 = vmatpush1.msra.mxu0 %v59
    %555 = vmatprep.subr.mxu0 %v64
    %556 = vmatpush1.msra.mxu0 %v63
    %557 = vmatprep.subr.mxu0 %v68
    %558 = vmatpush1.msra.mxu0 %v67
    %559 = vmatprep.subr.mxu0 %v72
    %560 = vmatpush1.msra.mxu0 %v71
    %561 = vmatprep.subr.mxu0 %v76
    %562 = vmatpush1.msra.mxu0 %v75
    %563 = vmatprep.subr.mxu0 %v80
    %564 = vmatpush1.msra.mxu0 %v79
    %565 = vmatprep.subr.mxu0 %v84
    %566 = vmatpush1.msra.mxu0 %v83
    %567 = vmatprep.subr.mxu0 %v88
    %568 = vmatpush1.msra.mxu0 %v87
    %569 = vmatprep.subr.mxu0 %v92
    %570 = vmatpush1.msra.mxu0 %v91
    %571 = vmatprep.subr.mxu0 %v96
    %572 = vmatpush1.msra.mxu0 %v95
    %573 = vmatprep.subr.mxu0 %v100
    %574 = vmatpush1.msra.mxu0 %v99
    %575 = vmatprep.subr.mxu0 %v104
    %576 = vmatpush1.msra.mxu0 %v103
    %577 = vmatprep.subr.mxu0 %v108
    %578 = vmatpush1.msra.mxu0 %v107
    %579 = vmatprep.subr.mxu0 0.0
    %580 = vmatpush1.msra.mxu0 0.0
    %581 = vmatprep.subr.mxu0 0.0
    %582 = vmatpush1.msra.mxu0 0.0
    %583 = vmatprep.subr.mxu0 0.0
    %584 = vmatpush1.msra.mxu0 0.0
    %585 = vmatprep.subr.mxu0 0.0
    %586 = vmatpush1.msra.mxu0 0.0
    %587 = vmatprep.subr.mxu0 0.0
    %588 = vmatpush1.msra.mxu0 0.0
    %589 = vmatprep.subr.mxu0 0.0
    %590 = vmatpush1.msra.mxu0 0.0
    %591 = vmatprep.subr.mxu0 0.0
    %592 = vmatpush1.msra.mxu0 0.0
    %593 = vmatprep.subr.mxu0 0.0
    %594 = vmatpush1.msra.mxu0 0.0
    %595 = vmatprep.subr.mxu0 0.0
    %596 = vmatpush1.msra.mxu0 0.0
    %597 = vmatprep.subr.mxu0 0.0
    %598 = vmatpush1.msra.mxu0 0.0
    %599 = vmatprep.subr.mxu0 0.0
    %600 = vmatpush1.msra.mxu0 0.0
    %601 = vmatprep.subr.mxu0 0.0
    %602 = vmatpush1.msra.mxu0 0.0
    %603 = vmatprep.subr.mxu0 0.0
    %604 = vmatpush1.msra.mxu0 0.0
    %605 = vmatprep.subr.mxu0 0.0
    %606 = vmatpush1.msra.mxu0 0.0
    %607 = vmatprep.subr.mxu0 0.0
    %608 = vmatpush1.msra.mxu0 0.0
    %609 = vmatprep.subr.mxu0 0.0
    %610 = vmatpush1.msra.mxu0 0.0
    %611 = vmatprep.mubr.f32.mxu0 0.0
    %612 = vmatmul.mubr.f32.gmra.mrb[0].mxu0 %v470
    %v613 = vpop.f32.mrb[0].mxu0
    %v614 = vadd.f32 0.0, %v613
    %v615 = vpop.f32.mrb[0].mxu0
    %v616 = vadd.f32 0.0, %v615
    %617 = vdwg.mxu0
    %v618 = vadd.f32 %v472, %v543
    %v619 = vadd.f32 %v473, %v545
    %v620 = vadd.f32 %v474, %v614
    %v621 = vadd.f32 %v475, %v616
    %v622 = vxor.u32 %v618, 2147483648
    %v623 = vmul.f32 %v622, 1.442695
    %v624 = vpow.pop %v623
    %v625 = vadd.f32 %v624, 1.0
    %v626 = vrcp.pop %v625
    %v627 = vmul.f32 1.0, %v626
    %v628 = vxor.u32 %v619, 2147483648
    %v629 = vmul.f32 %v628, 1.442695
    %v630 = vpow.pop %v629
    %v631 = vadd.f32 %v630, 1.0
    %v632 = vrcp.pop %v631
    %v633 = vmul.f32 1.0, %v632
    %v634 = vtanh.pop %v620
    %v635 = vxor.u32 %v621, 2147483648
    %v636 = vmul.f32 %v635, 1.442695
    %v637 = vpow.pop %v636
    %v638 = vadd.f32 %v637, 1.0
    %v639 = vrcp.pop %v638
    %v640 = vmul.f32 1.0, %v639
    %v641 = vmul.f32 %v633, %v468
    %v642 = vmul.f32 %v627, %v634
    %v643 = vadd.f32 %v641, %v642
    %v644 = vtanh.pop %v643
    %v645 = vmul.f32 %v640, %v644
    %s646 = scalar_lea.vmem [#allocation2], 64
    %v647 = vld [vmem:[%s646] sm:$0xff]
    %v648 = vld [vmem:[%s646 + $0x8] sm:$0xff]
    %v649 = vld [vmem:[%s646 + $0x10] sm:$0xff]
    %v650 = vld [vmem:[%s646 + $0x18] sm:$0xff]
    %651 = vmatprep.subr.mxu0 %v46
    %652 = vmatpush1.msra.mxu0 %v45
    %653 = vmatprep.subr.mxu0 %v50
    %654 = vmatpush1.msra.mxu0 %v49
    %655 = vmatprep.subr.mxu0 %v54
    %656 = vmatpush1.msra.mxu0 %v53
    %657 = vmatprep.subr.mxu0 %v58
    %658 = vmatpush1.msra.mxu0 %v57
    %659 = vmatprep.subr.mxu0 %v62
    %660 = vmatpush1.msra.mxu0 %v61
    %661 = vmatprep.subr.mxu0 %v66
    %662 = vmatpush1.msra.mxu0 %v65
    %663 = vmatprep.subr.mxu0 %v70
    %664 = vmatpush1.msra.mxu0 %v69
    %665 = vmatprep.subr.mxu0 %v74
    %666 = vmatpush1.msra.mxu0 %v73
    %667 = vmatprep.subr.mxu0 %v78
    %668 = vmatpush1.msra.mxu0 %v77
    %669 = vmatprep.subr.mxu0 %v82
    %670 = vmatpush1.msra.mxu0 %v81
    %671 = vmatprep.subr.mxu0 %v86
    %672 = vmatpush1.msra.mxu0 %v85
    %673 = vmatprep.subr.mxu0 %v90
    %674 = vmatpush1.msra.mxu0 %v89
    %675 = vmatprep.subr.mxu0 %v94
    %676 = vmatpush1.msra.mxu0 %v93
    %677 = vmatprep.subr.mxu0 %v98
    %678 = vmatpush1.msra.mxu0 %v97
    %679 = vmatprep.subr.mxu0 %v102
    %680 = vmatpush1.msra.mxu0 %v101
    %681 = vmatprep.subr.mxu0 %v106
    %682 = vmatpush1.msra.mxu0 %v105
    %683 = vmatprep.subr.mxu0 0.0
    %684 = vmatpush1.msra.mxu0 0.0
    %685 = vmatprep.subr.mxu0 0.0
    %686 = vmatpush1.msra.mxu0 0.0
    %687 = vmatprep.subr.mxu0 0.0
    %688 = vmatpush1.msra.mxu0 0.0
    %689 = vmatprep.subr.mxu0 0.0
    %690 = vmatpush1.msra.mxu0 0.0
    %691 = vmatprep.subr.mxu0 0.0
    %692 = vmatpush1.msra.mxu0 0.0
    %693 = vmatprep.subr.mxu0 0.0
    %694 = vmatpush1.msra.mxu0 0.0
    %695 = vmatprep.subr.mxu0 0.0
    %696 = vmatpush1.msra.mxu0 0.0
    %697 = vmatprep.subr.mxu0 0.0
    %698 = vmatpush1.msra.mxu0 0.0
    %699 = vmatprep.subr.mxu0 0.0
    %700 = vmatpush1.msra.mxu0 0.0
    %701 = vmatprep.subr.mxu0 0.0
    %702 = vmatpush1.msra.mxu0 0.0
    %703 = vmatprep.subr.mxu0 0.0
    %704 = vmatpush1.msra.mxu0 0.0
    %705 = vmatprep.subr.mxu0 0.0
    %706 = vmatpush1.msra.mxu0 0.0
    %707 = vmatprep.subr.mxu0 0.0
    %708 = vmatpush1.msra.mxu0 0.0
    %709 = vmatprep.subr.mxu0 0.0
    %710 = vmatpush1.msra.mxu0 0.0
    %711 = vmatprep.subr.mxu0 0.0
    %712 = vmatpush1.msra.mxu0 0.0
    %713 = vmatprep.subr.mxu0 0.0
    %714 = vmatpush1.msra.mxu0 0.0
    %715 = vmatprep.mubr.f32.mxu0 0.0
    %716 = vmatmul.mubr.f32.gmra.mrb[0].mxu0 %v645
    %v717 = vpop.f32.mrb[0].mxu0
    %v718 = vadd.f32 0.0, %v717
    %v719 = vpop.f32.mrb[0].mxu0
    %v720 = vadd.f32 0.0, %v719
    %721 = vdwg.mxu0
    %722 = vmatprep.subr.mxu0 %v48
    %723 = vmatpush1.msra.mxu0 %v47
    %724 = vmatprep.subr.mxu0 %v52
    %725 = vmatpush1.msra.mxu0 %v51
    %726 = vmatprep.subr.mxu0 %v56
    %727 = vmatpush1.msra.mxu0 %v55
    %728 = vmatprep.subr.mxu0 %v60
    %729 = vmatpush1.msra.mxu0 %v59
    %730 = vmatprep.subr.mxu0 %v64
    %731 = vmatpush1.msra.mxu0 %v63
    %732 = vmatprep.subr.mxu0 %v68
    %733 = vmatpush1.msra.mxu0 %v67
    %734 = vmatprep.subr.mxu0 %v72
    %735 = vmatpush1.msra.mxu0 %v71
    %736 = vmatprep.subr.mxu0 %v76
    %737 = vmatpush1.msra.mxu0 %v75
    %738 = vmatprep.subr.mxu0 %v80
    %739 = vmatpush1.msra.mxu0 %v79
    %740 = vmatprep.subr.mxu0 %v84
    %741 = vmatpush1.msra.mxu0 %v83
    %742 = vmatprep.subr.mxu0 %v88
    %743 = vmatpush1.msra.mxu0 %v87
    %744 = vmatprep.subr.mxu0 %v92
    %745 = vmatpush1.msra.mxu0 %v91
    %746 = vmatprep.subr.mxu0 %v96
    %747 = vmatpush1.msra.mxu0 %v95
    %748 = vmatprep.subr.mxu0 %v100
    %749 = vmatpush1.msra.mxu0 %v99
    %750 = vmatprep.subr.mxu0 %v104
    %751 = vmatpush1.msra.mxu0 %v103
    %752 = vmatprep.subr.mxu0 %v108
    %753 = vmatpush1.msra.mxu0 %v107
    %754 = vmatprep.subr.mxu0 0.0
    %755 = vmatpush1.msra.mxu0 0.0
    %756 = vmatprep.subr.mxu0 0.0
    %757 = vmatpush1.msra.mxu0 0.0
    %758 = vmatprep.subr.mxu0 0.0
    %759 = vmatpush1.msra.mxu0 0.0
    %760 = vmatprep.subr.mxu0 0.0
    %761 = vmatpush1.msra.mxu0 0.0
    %762 = vmatprep.subr.mxu0 0.0
    %763 = vmatpush1.msra.mxu0 0.0
    %764 = vmatprep.subr.mxu0 0.0
    %765 = vmatpush1.msra.mxu0 0.0
    %766 = vmatprep.subr.mxu0 0.0
    %767 = vmatpush1.msra.mxu0 0.0
    %768 = vmatprep.subr.mxu0 0.0
    %769 = vmatpush1.msra.mxu0 0.0
    %770 = vmatprep.subr.mxu0 0.0
    %771 = vmatpush1.msra.mxu0 0.0
    %772 = vmatprep.subr.mxu0 0.0
    %773 = vmatpush1.msra.mxu0 0.0
    %774 = vmatprep.subr.mxu0 0.0
    %775 = vmatpush1.msra.mxu0 0.0
    %776 = vmatprep.subr.mxu0 0.0
    %777 = vmatpush1.msra.mxu0 0.0
    %778 = vmatprep.subr.mxu0 0.0
    %779 = vmatpush1.msra.mxu0 0.0
    %780 = vmatprep.subr.mxu0 0.0
    %781 = vmatpush1.msra.mxu0 0.0
    %782 = vmatprep.subr.mxu0 0.0
    %783 = vmatpush1.msra.mxu0 0.0
    %784 = vmatprep.subr.mxu0 0.0
    %785 = vmatpush1.msra.mxu0 0.0
    %786 = vmatprep.mubr.f32.mxu0 0.0
    %787 = vmatmul.mubr.f32.gmra.mrb[0].mxu0 %v645
    %v788 = vpop.f32.mrb[0].mxu0
    %v789 = vadd.f32 0.0, %v788
    %v790 = vpop.f32.mrb[0].mxu0
    %v791 = vadd.f32 0.0, %v790
    %792 = vdwg.mxu0
    %v793 = vadd.f32 %v647, %v718
    %v794 = vadd.f32 %v648, %v720
    %v795 = vadd.f32 %v649, %v789
    %v796 = vadd.f32 %v650, %v791
    %v797 = vxor.u32 %v793, 2147483648
    %v798 = vmul.f32 %v797, 1.442695
    %v799 = vpow.pop %v798
    %v800 = vadd.f32 %v799, 1.0
    %v801 = vrcp.pop %v800
    %v802 = vmul.f32 1.0, %v801
    %v803 = vxor.u32 %v794, 2147483648
    %v804 = vmul.f32 %v803, 1.442695
    %v805 = vpow.pop %v804
    %v806 = vadd.f32 %v805, 1.0
    %v807 = vrcp.pop %v806
    %v808 = vmul.f32 1.0, %v807
    %v809 = vtanh.pop %v795
    %v810 = vxor.u32 %v796, 2147483648
    %v811 = vmul.f32 %v810, 1.442695
    %v812 = vpow.pop %v811
    %v813 = vadd.f32 %v812, 1.0
    %v814 = vrcp.pop %v813
    %v815 = vmul.f32 1.0, %v814
    %v816 = vmul.f32 %v808, %v643
    %v817 = vmul.f32 %v802, %v809
    %v818 = vadd.f32 %v816, %v817
    %v819 = vtanh.pop %v818
    %v820 = vmul.f32 %v815, %v819
    %s821 = scalar_lea.vmem [#allocation2], 96
    %v822 = vld [vmem:[%s821] sm:$0xff]
    %v823 = vld [vmem:[%s821 + $0x8] sm:$0xff]
    %v824 = vld [vmem:[%s821 + $0x10] sm:$0xff]
    %v825 = vld [vmem:[%s821 + $0x18] sm:$0xff]
    %826 = vmatprep.subr.mxu0 %v46
    %827 = vmatpush1.msra.mxu0 %v45
    %828 = vmatprep.subr.mxu0 %v50
    %829 = vmatpush1.msra.mxu0 %v49
    %830 = vmatprep.subr.mxu0 %v54
    %831 = vmatpush1.msra.mxu0 %v53
    %832 = vmatprep.subr.mxu0 %v58
    %833 = vmatpush1.msra.mxu0 %v57
    %834 = vmatprep.subr.mxu0 %v62
    %835 = vmatpush1.msra.mxu0 %v61
    %836 = vmatprep.subr.mxu0 %v66
    %837 = vmatpush1.msra.mxu0 %v65
    %838 = vmatprep.subr.mxu0 %v70
    %839 = vmatpush1.msra.mxu0 %v69
    %840 = vmatprep.subr.mxu0 %v74
    %841 = vmatpush1.msra.mxu0 %v73
    %842 = vmatprep.subr.mxu0 %v78
    %843 = vmatpush1.msra.mxu0 %v77
    %844 = vmatprep.subr.mxu0 %v82
    %845 = vmatpush1.msra.mxu0 %v81
    %846 = vmatprep.subr.mxu0 %v86
    %847 = vmatpush1.msra.mxu0 %v85
    %848 = vmatprep.subr.mxu0 %v90
    %849 = vmatpush1.msra.mxu0 %v89
    %850 = vmatprep.subr.mxu0 %v94
    %851 = vmatpush1.msra.mxu0 %v93
    %852 = vmatprep.subr.mxu0 %v98
    %853 = vmatpush1.msra.mxu0 %v97
    %854 = vmatprep.subr.mxu0 %v102
    %855 = vmatpush1.msra.mxu0 %v101
    %856 = vmatprep.subr.mxu0 %v106
    %857 = vmatpush1.msra.mxu0 %v105
    %858 = vmatprep.subr.mxu0 0.0
    %859 = vmatpush1.msra.mxu0 0.0
    %860 = vmatprep.subr.mxu0 0.0
    %861 = vmatpush1.msra.mxu0 0.0
    %862 = vmatprep.subr.mxu0 0.0
    %863 = vmatpush1.msra.mxu0 0.0
    %864 = vmatprep.subr.mxu0 0.0
    %865 = vmatpush1.msra.mxu0 0.0
    %866 = vmatprep.subr.mxu0 0.0
    %867 = vmatpush1.msra.mxu0 0.0
    %868 = vmatprep.subr.mxu0 0.0
    %869 = vmatpush1.msra.mxu0 0.0
    %870 = vmatprep.subr.mxu0 0.0
    %871 = vmatpush1.msra.mxu0 0.0
    %872 = vmatprep.subr.mxu0 0.0
    %873 = vmatpush1.msra.mxu0 0.0
    %874 = vmatprep.subr.mxu0 0.0
    %875 = vmatpush1.msra.mxu0 0.0
    %876 = vmatprep.subr.mxu0 0.0
    %877 = vmatpush1.msra.mxu0 0.0
    %878 = vmatprep.subr.mxu0 0.0
    %879 = vmatpush1.msra.mxu0 0.0
    %880 = vmatprep.subr.mxu0 0.0
    %881 = vmatpush1.msra.mxu0 0.0
    %882 = vmatprep.subr.mxu0 0.0
    %883 = vmatpush1.msra.mxu0 0.0
    %884 = vmatprep.subr.mxu0 0.0
    %885 = vmatpush1.msra.mxu0 0.0
    %886 = vmatprep.subr.mxu0 0.0
    %887 = vmatpush1.msra.mxu0 0.0
    %888 = vmatprep.subr.mxu0 0.0
    %889 = vmatpush1.msra.mxu0 0.0
    %890 = vmatprep.mubr.f32.mxu0 0.0
    %891 = vmatmul.mubr.f32.gmra.mrb[0].mxu0 %v820
    %v892 = vpop.f32.mrb[0].mxu0
    %v893 = vadd.f32 0.0, %v892
    %v894 = vpop.f32.mrb[0].mxu0
    %v895 = vadd.f32 0.0, %v894
    %896 = vdwg.mxu0
    %897 = vmatprep.subr.mxu0 %v48
    %898 = vmatpush1.msra.mxu0 %v47
    %899 = vmatprep.subr.mxu0 %v52
    %900 = vmatpush1.msra.mxu0 %v51
    %901 = vmatprep.subr.mxu0 %v56
    %902 = vmatpush1.msra.mxu0 %v55
    %903 = vmatprep.subr.mxu0 %v60
    %904 = vmatpush1.msra.mxu0 %v59
    %905 = vmatprep.subr.mxu0 %v64
    %906 = vmatpush1.msra.mxu0 %v63
    %907 = vmatprep.subr.mxu0 %v68
    %908 = vmatpush1.msra.mxu0 %v67
    %909 = vmatprep.subr.mxu0 %v72
    %910 = vmatpush1.msra.mxu0 %v71
    %911 = vmatprep.subr.mxu0 %v76
    %912 = vmatpush1.msra.mxu0 %v75
    %913 = vmatprep.subr.mxu0 %v80
    %914 = vmatpush1.msra.mxu0 %v79
    %915 = vmatprep.subr.mxu0 %v84
    %916 = vmatpush1.msra.mxu0 %v83
    %917 = vmatprep.subr.mxu0 %v88
    %918 = vmatpush1.msra.mxu0 %v87
    %919 = vmatprep.subr.mxu0 %v92
    %920 = vmatpush1.msra.mxu0 %v91
    %921 = vmatprep.subr.mxu0 %v96
    %922 = vmatpush1.msra.mxu0 %v95
    %923 = vmatprep.subr.mxu0 %v100
    %924 = vmatpush1.msra.mxu0 %v99
    %925 = vmatprep.subr.mxu0 %v104
    %926 = vmatpush1.msra.mxu0 %v103
    %927 = vmatprep.subr.mxu0 %v108
    %928 = vmatpush1.msra.mxu0 %v107
    %929 = vmatprep.subr.mxu0 0.0
    %930 = vmatpush1.msra.mxu0 0.0
    %931 = vmatprep.subr.mxu0 0.0
    %932 = vmatpush1.msra.mxu0 0.0
    %933 = vmatprep.subr.mxu0 0.0
    %934 = vmatpush1.msra.mxu0 0.0
    %935 = vmatprep.subr.mxu0 0.0
    %936 = vmatpush1.msra.mxu0 0.0
    %937 = vmatprep.subr.mxu0 0.0
    %938 = vmatpush1.msra.mxu0 0.0
    %939 = vmatprep.subr.mxu0 0.0
    %940 = vmatpush1.msra.mxu0 0.0
    %941 = vmatprep.subr.mxu0 0.0
    %942 = vmatpush1.msra.mxu0 0.0
    %943 = vmatprep.subr.mxu0 0.0
    %944 = vmatpush1.msra.mxu0 0.0
    %945 = vmatprep.subr.mxu0 0.0
    %946 = vmatpush1.msra.mxu0 0.0
    %947 = vmatprep.subr.mxu0 0.0
    %948 = vmatpush1.msra.mxu0 0.0
    %949 = vmatprep.subr.mxu0 0.0
    %950 = vmatpush1.msra.mxu0 0.0
    %951 = vmatprep.subr.mxu0 0.0
    %952 = vmatpush1.msra.mxu0 0.0
    %953 = vmatprep.subr.mxu0 0.0
    %954 = vmatpush1.msra.mxu0 0.0
    %955 = vmatprep.subr.mxu0 0.0
    %956 = vmatpush1.msra.mxu0 0.0
    %957 = vmatprep.subr.mxu0 0.0
    %958 = vmatpush1.msra.mxu0 0.0
    %959 = vmatprep.subr.mxu0 0.0
    %960 = vmatpush1.msra.mxu0 0.0
    %961 = vmatprep.mubr.f32.mxu0 0.0
    %962 = vmatmul.mubr.f32.gmra.mrb[0].mxu0 %v820
    %v963 = vpop.f32.mrb[0].mxu0
    %v964 = vadd.f32 0.0, %v963
    %v965 = vpop.f32.mrb[0].mxu0
    %v966 = vadd.f32 0.0, %v965
    %967 = vdwg.mxu0
    %v968 = vadd.f32 %v822, %v893
    %v969 = vadd.f32 %v823, %v895
    %v970 = vadd.f32 %v824, %v964
    %v971 = vadd.f32 %v825, %v966
    %v972 = vxor.u32 %v968, 2147483648
    %v973 = vmul.f32 %v972, 1.442695
    %v974 = vpow.pop %v973
    %v975 = vadd.f32 %v974, 1.0
    %v976 = vrcp.pop %v975
    %v977 = vmul.f32 1.0, %v976
    %v978 = vxor.u32 %v969, 2147483648
    %v979 = vmul.f32 %v978, 1.442695
    %v980 = vpow.pop %v979
    %v981 = vadd.f32 %v980, 1.0
    %v982 = vrcp.pop %v981
    %v983 = vmul.f32 1.0, %v982
    %v984 = vtanh.pop %v970
    %v985 = vxor.u32 %v971, 2147483648
    %v986 = vmul.f32 %v985, 1.442695
    %v987 = vpow.pop %v986
    %v988 = vadd.f32 %v987, 1.0
    %v989 = vrcp.pop %v988
    %v990 = vmul.f32 1.0, %v989
    %v991 = vmul.f32 %v983, %v818
    %v992 = vmul.f32 %v977, %v984
    %v993 = vadd.f32 %v991, %v992
    %v994 = vtanh.pop %v993
    %v995 = vmul.f32 %v990, %v994
    %s996 = scalar_lea.vmem [#allocation2], 128
    %v997 = vld [vmem:[%s996] sm:$0xff]
    %v998 = vld [vmem:[%s996 + $0x8] sm:$0xff]
    %v999 = vld [vmem:[%s996 + $0x10] sm:$0xff]
    %v1000 = vld [vmem:[%s996 + $0x18] sm:$0xff]
    %1001 = vmatprep.subr.mxu0 %v46
    %1002 = vmatpush1.msra.mxu0 %v45
    %1003 = vmatprep.subr.mxu0 %v50
    %1004 = vmatpush1.msra.mxu0 %v49
    %1005 = vmatprep.subr.mxu0 %v54
    %1006 = vmatpush1.msra.mxu0 %v53
    %1007 = vmatprep.subr.mxu0 %v58
    %1008 = vmatpush1.msra.mxu0 %v57
    %1009 = vmatprep.subr.mxu0 %v62
    %1010 = vmatpush1.msra.mxu0 %v61
    %1011 = vmatprep.subr.mxu0 %v66
    %1012 = vmatpush1.msra.mxu0 %v65
    %1013 = vmatprep.subr.mxu0 %v70
    %1014 = vmatpush1.msra.mxu0 %v69
    %1015 = vmatprep.subr.mxu0 %v74
    %1016 = vmatpush1.msra.mxu0 %v73
    %1017 = vmatprep.subr.mxu0 %v78
    %1018 = vmatpush1.msra.mxu0 %v77
    %1019 = vmatprep.subr.mxu0 %v82
    %1020 = vmatpush1.msra.mxu0 %v81
    %1021 = vmatprep.subr.mxu0 %v86
    %1022 = vmatpush1.msra.mxu0 %v85
    %1023 = vmatprep.subr.mxu0 %v90
    %1024 = vmatpush1.msra.mxu0 %v89
    %1025 = vmatprep.subr.mxu0 %v94
    %1026 = vmatpush1.msra.mxu0 %v93
    %1027 = vmatprep.subr.mxu0 %v98
    %1028 = vmatpush1.msra.mxu0 %v97
    %1029 = vmatprep.subr.mxu0 %v102
    %1030 = vmatpush1.msra.mxu0 %v101
    %1031 = vmatprep.subr.mxu0 %v106
    %1032 = vmatpush1.msra.mxu0 %v105
    %1033 = vmatprep.subr.mxu0 0.0
    %1034 = vmatpush1.msra.mxu0 0.0
    %1035 = vmatprep.subr.mxu0 0.0
    %1036 = vmatpush1.msra.mxu0 0.0
    %1037 = vmatprep.subr.mxu0 0.0
    %1038 = vmatpush1.msra.mxu0 0.0
    %1039 = vmatprep.subr.mxu0 0.0
    %1040 = vmatpush1.msra.mxu0 0.0
    %1041 = vmatprep.subr.mxu0 0.0
    %1042 = vmatpush1.msra.mxu0 0.0
    %1043 = vmatprep.subr.mxu0 0.0
    %1044 = vmatpush1.msra.mxu0 0.0
    %1045 = vmatprep.subr.mxu0 0.0
    %1046 = vmatpush1.msra.mxu0 0.0
    %1047 = vmatprep.subr.mxu0 0.0
    %1048 = vmatpush1.msra.mxu0 0.0
    %1049 = vmatprep.subr.mxu0 0.0
    %1050 = vmatpush1.msra.mxu0 0.0
    %1051 = vmatprep.subr.mxu0 0.0
    %1052 = vmatpush1.msra.mxu0 0.0
    %1053 = vmatprep.subr.mxu0 0.0
    %1054 = vmatpush1.msra.mxu0 0.0
    %1055 = vmatprep.subr.mxu0 0.0
    %1056 = vmatpush1.msra.mxu0 0.0
    %1057 = vmatprep.subr.mxu0 0.0
    %1058 = vmatpush1.msra.mxu0 0.0
    %1059 = vmatprep.subr.mxu0 0.0
    %1060 = vmatpush1.msra.mxu0 0.0
    %1061 = vmatprep.subr.mxu0 0.0
    %1062 = vmatpush1.msra.mxu0 0.0
    %1063 = vmatprep.subr.mxu0 0.0
    %1064 = vmatpush1.msra.mxu0 0.0
    %1065 = vmatprep.mubr.f32.mxu0 0.0
    %1066 = vmatmul.mubr.f32.gmra.mrb[0].mxu0 %v995
    %v1067 = vpop.f32.mrb[0].mxu0
    %v1068 = vadd.f32 0.0, %v1067
    %v1069 = vpop.f32.mrb[0].mxu0
    %v1070 = vadd.f32 0.0, %v1069
    %1071 = vdwg.mxu0
    %1072 = vmatprep.subr.mxu0 %v48
    %1073 = vmatpush1.msra.mxu0 %v47
    %1074 = vmatprep.subr.mxu0 %v52
    %1075 = vmatpush1.msra.mxu0 %v51
    %1076 = vmatprep.subr.mxu0 %v56
    %1077 = vmatpush1.msra.mxu0 %v55
    %1078 = vmatprep.subr.mxu0 %v60
    %1079 = vmatpush1.msra.mxu0 %v59
    %1080 = vmatprep.subr.mxu0 %v64
    %1081 = vmatpush1.msra.mxu0 %v63
    %1082 = vmatprep.subr.mxu0 %v68
    %1083 = vmatpush1.msra.mxu0 %v67
    %1084 = vmatprep.subr.mxu0 %v72
    %1085 = vmatpush1.msra.mxu0 %v71
    %1086 = vmatprep.subr.mxu0 %v76
    %1087 = vmatpush1.msra.mxu0 %v75
    %1088 = vmatprep.subr.mxu0 %v80
    %1089 = vmatpush1.msra.mxu0 %v79
    %1090 = vmatprep.subr.mxu0 %v84
    %1091 = vmatpush1.msra.mxu0 %v83
    %1092 = vmatprep.subr.mxu0 %v88
    %1093 = vmatpush1.msra.mxu0 %v87
    %1094 = vmatprep.subr.mxu0 %v92
    %1095 = vmatpush1.msra.mxu0 %v91
    %1096 = vmatprep.subr.mxu0 %v96
    %1097 = vmatpush1.msra.mxu0 %v95
    %1098 = vmatprep.subr.mxu0 %v100
    %1099 = vmatpush1.msra.mxu0 %v99
    %1100 = vmatprep.subr.mxu0 %v104
    %1101 = vmatpush1.msra.mxu0 %v103
    %1102 = vmatprep.subr.mxu0 %v108
    %1103 = vmatpush1.msra.mxu0 %v107
    %1104 = vmatprep.subr.mxu0 0.0
    %1105 = vmatpush1.msra.mxu0 0.0
    %1106 = vmatprep.subr.mxu0 0.0
    %1107 = vmatpush1.msra.mxu0 0.0
    %1108 = vmatprep.subr.mxu0 0.0
    %1109 = vmatpush1.msra.mxu0 0.0
    %1110 = vmatprep.subr.mxu0 0.0
    %1111 = vmatpush1.msra.mxu0 0.0
    %1112 = vmatprep.subr.mxu0 0.0
    %1113 = vmatpush1.msra.mxu0 0.0
    %1114 = vmatprep.subr.mxu0 0.0
    %1115 = vmatpush1.msra.mxu0 0.0
    %1116 = vmatprep.subr.mxu0 0.0
    %1117 = vmatpush1.msra.mxu0 0.0
    %1118 = vmatprep.subr.mxu0 0.0
    %1119 = vmatpush1.msra.mxu0 0.0
    %1120 = vmatprep.subr.mxu0 0.0
    %1121 = vmatpush1.msra.mxu0 0.0
    %1122 = vmatprep.subr.mxu0 0.0
    %1123 = vmatpush1.msra.mxu0 0.0
    %1124 = vmatprep.subr.mxu0 0.0
    %1125 = vmatpush1.msra.mxu0 0.0
    %1126 = vmatprep.subr.mxu0 0.0
    %1127 = vmatpush1.msra.mxu0 0.0
    %1128 = vmatprep.subr.mxu0 0.0
    %1129 = vmatpush1.msra.mxu0 0.0
    %1130 = vmatprep.subr.mxu0 0.0
    %1131 = vmatpush1.msra.mxu0 0.0
    %1132 = vmatprep.subr.mxu0 0.0
    %1133 = vmatpush1.msra.mxu0 0.0
    %1134 = vmatprep.subr.mxu0 0.0
    %1135 = vmatpush1.msra.mxu0 0.0
    %1136 = vmatprep.mubr.f32.mxu0 0.0
    %1137 = vmatmul.mubr.f32.gmra.mrb[0].mxu0 %v995
    %v1138 = vpop.f32.mrb[0].mxu0
    %v1139 = vadd.f32 0.0, %v1138
    %v1140 = vpop.f32.mrb[0].mxu0
    %v1141 = vadd.f32 0.0, %v1140
    %1142 = vdwg.mxu0
    %v1143 = vadd.f32 %v997, %v1068
    %v1144 = vadd.f32 %v998, %v1070
    %v1145 = vadd.f32 %v999, %v1139
    %v1146 = vadd.f32 %v1000, %v1141
    %v1147 = vxor.u32 %v1143, 2147483648
    %v1148 = vmul.f32 %v1147, 1.442695
    %v1149 = vpow.pop %v1148
    %v1150 = vadd.f32 %v1149, 1.0
    %v1151 = vrcp.pop %v1150
    %v1152 = vmul.f32 1.0, %v1151
    %v1153 = vxor.u32 %v1144, 2147483648
    %v1154 = vmul.f32 %v1153, 1.442695
    %v1155 = vpow.pop %v1154
    %v1156 = vadd.f32 %v1155, 1.0
    %v1157 = vrcp.pop %v1156
    %v1158 = vmul.f32 1.0, %v1157
    %v1159 = vtanh.pop %v1145
    %v1160 = vxor.u32 %v1146, 2147483648
    %v1161 = vmul.f32 %v1160, 1.442695
    %v1162 = vpow.pop %v1161
    %v1163 = vadd.f32 %v1162, 1.0
    %v1164 = vrcp.pop %v1163
    %v1165 = vmul.f32 1.0, %v1164
    %v1166 = vmul.f32 %v1158, %v993
    %v1167 = vmul.f32 %v1152, %v1159
    %v1168 = vadd.f32 %v1166, %v1167
    %v1169 = vtanh.pop %v1168
    %v1170 = vmul.f32 %v1165, %v1169
    %s1171 = scalar_lea.vmem [#allocation2], 160
    %v1172 = vld [vmem:[%s1171] sm:$0xff]
    %v1173 = vld [vmem:[%s1171 + $0x8] sm:$0xff]
    %v1174 = vld [vmem:[%s1171 + $0x10] sm:$0xff]
    %v1175 = vld [vmem:[%s1171 + $0x18] sm:$0xff]
    %1176 = vmatprep.subr.mxu0 %v46
    %1177 = vmatpush1.msra.mxu0 %v45
    %1178 = vmatprep.subr.mxu0 %v50
    %1179 = vmatpush1.msra.mxu0 %v49
    %1180 = vmatprep.subr.mxu0 %v54
    %1181 = vmatpush1.msra.mxu0 %v53
    %1182 = vmatprep.subr.mxu0 %v58
    %1183 = vmatpush1.msra.mxu0 %v57
    %1184 = vmatprep.subr.mxu0 %v62
    %1185 = vmatpush1.msra.mxu0 %v61
    %1186 = vmatprep.subr.mxu0 %v66
    %1187 = vmatpush1.msra.mxu0 %v65
    %1188 = vmatprep.subr.mxu0 %v70
    %1189 = vmatpush1.msra.mxu0 %v69
    %1190 = vmatprep.subr.mxu0 %v74
    %1191 = vmatpush1.msra.mxu0 %v73
    %1192 = vmatprep.subr.mxu0 %v78
    %1193 = vmatpush1.msra.mxu0 %v77
    %1194 = vmatprep.subr.mxu0 %v82
    %1195 = vmatpush1.msra.mxu0 %v81
    %1196 = vmatprep.subr.mxu0 %v86
    %1197 = vmatpush1.msra.mxu0 %v85
    %1198 = vmatprep.subr.mxu0 %v90
    %1199 = vmatpush1.msra.mxu0 %v89
    %1200 = vmatprep.subr.mxu0 %v94
    %1201 = vmatpush1.msra.mxu0 %v93
    %1202 = vmatprep.subr.mxu0 %v98
    %1203 = vmatpush1.msra.mxu0 %v97
    %1204 = vmatprep.subr.mxu0 %v102
    %1205 = vmatpush1.msra.mxu0 %v101
    %1206 = vmatprep.subr.mxu0 %v106
    %1207 = vmatpush1.msra.mxu0 %v105
    %1208 = vmatprep.subr.mxu0 0.0
    %1209 = vmatpush1.msra.mxu0 0.0
    %1210 = vmatprep.subr.mxu0 0.0
    %1211 = vmatpush1.msra.mxu0 0.0
    %1212 = vmatprep.subr.mxu0 0.0
    %1213 = vmatpush1.msra.mxu0 0.0
    %1214 = vmatprep.subr.mxu0 0.0
    %1215 = vmatpush1.msra.mxu0 0.0
    %1216 = vmatprep.subr.mxu0 0.0
    %1217 = vmatpush1.msra.mxu0 0.0
    %1218 = vmatprep.subr.mxu0 0.0
    %1219 = vmatpush1.msra.mxu0 0.0
    %1220 = vmatprep.subr.mxu0 0.0
    %1221 = vmatpush1.msra.mxu0 0.0
    %1222 = vmatprep.subr.mxu0 0.0
    %1223 = vmatpush1.msra.mxu0 0.0
    %1224 = vmatprep.subr.mxu0 0.0
    %1225 = vmatpush1.msra.mxu0 0.0
    %1226 = vmatprep.subr.mxu0 0.0
    %1227 = vmatpush1.msra.mxu0 0.0
    %1228 = vmatprep.subr.mxu0 0.0
    %1229 = vmatpush1.msra.mxu0 0.0
    %1230 = vmatprep.subr.mxu0 0.0
    %1231 = vmatpush1.msra.mxu0 0.0
    %1232 = vmatprep.subr.mxu0 0.0
    %1233 = vmatpush1.msra.mxu0 0.0
    %1234 = vmatprep.subr.mxu0 0.0
    %1235 = vmatpush1.msra.mxu0 0.0
    %1236 = vmatprep.subr.mxu0 0.0
    %1237 = vmatpush1.msra.mxu0 0.0
    %1238 = vmatprep.subr.mxu0 0.0
    %1239 = vmatpush1.msra.mxu0 0.0
    %1240 = vmatprep.mubr.f32.mxu0 0.0
    %1241 = vmatmul.mubr.f32.gmra.mrb[0].mxu0 %v1170
    %v1242 = vpop.f32.mrb[0].mxu0
    %v1243 = vadd.f32 0.0, %v1242
    %v1244 = vpop.f32.mrb[0].mxu0
    %v1245 = vadd.f32 0.0, %v1244
    %1246 = vdwg.mxu0
    %1247 = vmatprep.subr.mxu0 %v48
    %1248 = vmatpush1.msra.mxu0 %v47
    %1249 = vmatprep.subr.mxu0 %v52
    %1250 = vmatpush1.msra.mxu0 %v51
    %1251 = vmatprep.subr.mxu0 %v56
    %1252 = vmatpush1.msra.mxu0 %v55
    %1253 = vmatprep.subr.mxu0 %v60
    %1254 = vmatpush1.msra.mxu0 %v59
    %1255 = vmatprep.subr.mxu0 %v64
    %1256 = vmatpush1.msra.mxu0 %v63
    %1257 = vmatprep.subr.mxu0 %v68
    %1258 = vmatpush1.msra.mxu0 %v67
    %1259 = vmatprep.subr.mxu0 %v72
    %1260 = vmatpush1.msra.mxu0 %v71
    %1261 = vmatprep.subr.mxu0 %v76
    %1262 = vmatpush1.msra.mxu0 %v75
    %1263 = vmatprep.subr.mxu0 %v80
    %1264 = vmatpush1.msra.mxu0 %v79
    %1265 = vmatprep.subr.mxu0 %v84
    %1266 = vmatpush1.msra.mxu0 %v83
    %1267 = vmatprep.subr.mxu0 %v88
    %1268 = vmatpush1.msra.mxu0 %v87
    %1269 = vmatprep.subr.mxu0 %v92
    %1270 = vmatpush1.msra.mxu0 %v91
    %1271 = vmatprep.subr.mxu0 %v96
    %1272 = vmatpush1.msra.mxu0 %v95
    %1273 = vmatprep.subr.mxu0 %v100
    %1274 = vmatpush1.msra.mxu0 %v99
    %1275 = vmatprep.subr.mxu0 %v104
    %1276 = vmatpush1.msra.mxu0 %v103
    %1277 = vmatprep.subr.mxu0 %v108
    %1278 = vmatpush1.msra.mxu0 %v107
    %1279 = vmatprep.subr.mxu0 0.0
    %1280 = vmatpush1.msra.mxu0 0.0
    %1281 = vmatprep.subr.mxu0 0.0
    %1282 = vmatpush1.msra.mxu0 0.0
    %1283 = vmatprep.subr.mxu0 0.0
    %1284 = vmatpush1.msra.mxu0 0.0
    %1285 = vmatprep.subr.mxu0 0.0
    %1286 = vmatpush1.msra.mxu0 0.0
    %1287 = vmatprep.subr.mxu0 0.0
    %1288 = vmatpush1.msra.mxu0 0.0
    %1289 = vmatprep.subr.mxu0 0.0
    %1290 = vmatpush1.msra.mxu0 0.0
    %1291 = vmatprep.subr.mxu0 0.0
    %1292 = vmatpush1.msra.mxu0 0.0
    %1293 = vmatprep.subr.mxu0 0.0
    %1294 = vmatpush1.msra.mxu0 0.0
    %1295 = vmatprep.subr.mxu0 0.0
    %1296 = vmatpush1.msra.mxu0 0.0
    %1297 = vmatprep.subr.mxu0 0.0
    %1298 = vmatpush1.msra.mxu0 0.0
    %1299 = vmatprep.subr.mxu0 0.0
    %1300 = vmatpush1.msra.mxu0 0.0
    %1301 = vmatprep.subr.mxu0 0.0
    %1302 = vmatpush1.msra.mxu0 0.0
    %1303 = vmatprep.subr.mxu0 0.0
    %1304 = vmatpush1.msra.mxu0 0.0
    %1305 = vmatprep.subr.mxu0 0.0
    %1306 = vmatpush1.msra.mxu0 0.0
    %1307 = vmatprep.subr.mxu0 0.0
    %1308 = vmatpush1.msra.mxu0 0.0
    %1309 = vmatprep.subr.mxu0 0.0
    %1310 = vmatpush1.msra.mxu0 0.0
    %1311 = vmatprep.mubr.f32.mxu0 0.0
    %1312 = vmatmul.mubr.f32.gmra.mrb[0].mxu0 %v1170
    %v1313 = vpop.f32.mrb[0].mxu0
    %v1314 = vadd.f32 0.0, %v1313
    %v1315 = vpop.f32.mrb[0].mxu0
    %v1316 = vadd.f32 0.0, %v1315
    %1317 = vdwg.mxu0
    %v1318 = vadd.f32 %v1172, %v1243
    %v1319 = vadd.f32 %v1173, %v1245
    %v1320 = vadd.f32 %v1174, %v1314
    %v1321 = vadd.f32 %v1175, %v1316
    %v1322 = vxor.u32 %v1318, 2147483648
    %v1323 = vmul.f32 %v1322, 1.442695
    %v1324 = vpow.pop %v1323
    %v1325 = vadd.f32 %v1324, 1.0
    %v1326 = vrcp.pop %v1325
    %v1327 = vmul.f32 1.0, %v1326
    %v1328 = vxor.u32 %v1319, 2147483648
    %v1329 = vmul.f32 %v1328, 1.442695
    %v1330 = vpow.pop %v1329
    %v1331 = vadd.f32 %v1330, 1.0
    %v1332 = vrcp.pop %v1331
    %v1333 = vmul.f32 1.0, %v1332
    %v1334 = vtanh.pop %v1320
    %v1335 = vxor.u32 %v1321, 2147483648
    %v1336 = vmul.f32 %v1335, 1.442695
    %v1337 = vpow.pop %v1336
    %v1338 = vadd.f32 %v1337, 1.0
    %v1339 = vrcp.pop %v1338
    %v1340 = vmul.f32 1.0, %v1339
    %v1341 = vmul.f32 %v1333, %v1168
    %v1342 = vmul.f32 %v1327, %v1334
    %v1343 = vadd.f32 %v1341, %v1342
    %v1344 = vtanh.pop %v1343
    %v1345 = vmul.f32 %v1340, %v1344
    %s1346 = scalar_lea.vmem [#allocation2], 192
    %v1347 = vld [vmem:[%s1346] sm:$0xff]
    %v1348 = vld [vmem:[%s1346 + $0x8] sm:$0xff]
    %v1349 = vld [vmem:[%s1346 + $0x10] sm:$0xff]
    %v1350 = vld [vmem:[%s1346 + $0x18] sm:$0xff]
    %1351 = vmatprep.subr.mxu0 %v46
    %1352 = vmatpush1.msra.mxu0 %v45
    %1353 = vmatprep.subr.mxu0 %v50
    %1354 = vmatpush1.msra.mxu0 %v49
    %1355 = vmatprep.subr.mxu0 %v54
    %1356 = vmatpush1.msra.mxu0 %v53
    %1357 = vmatprep.subr.mxu0 %v58
    %1358 = vmatpush1.msra.mxu0 %v57
    %1359 = vmatprep.subr.mxu0 %v62
    %1360 = vmatpush1.msra.mxu0 %v61
    %1361 = vmatprep.subr.mxu0 %v66
    %1362 = vmatpush1.msra.mxu0 %v65
    %1363 = vmatprep.subr.mxu0 %v70
    %1364 = vmatpush1.msra.mxu0 %v69
    %1365 = vmatprep.subr.mxu0 %v74
    %1366 = vmatpush1.msra.mxu0 %v73
    %1367 = vmatprep.subr.mxu0 %v78
    %1368 = vmatpush1.msra.mxu0 %v77
    %1369 = vmatprep.subr.mxu0 %v82
    %1370 = vmatpush1.msra.mxu0 %v81
    %1371 = vmatprep.subr.mxu0 %v86
    %1372 = vmatpush1.msra.mxu0 %v85
    %1373 = vmatprep.subr.mxu0 %v90
    %1374 = vmatpush1.msra.mxu0 %v89
    %1375 = vmatprep.subr.mxu0 %v94
    %1376 = vmatpush1.msra.mxu0 %v93
    %1377 = vmatprep.subr.mxu0 %v98
    %1378 = vmatpush1.msra.mxu0 %v97
    %1379 = vmatprep.subr.mxu0 %v102
    %1380 = vmatpush1.msra.mxu0 %v101
    %1381 = vmatprep.subr.mxu0 %v106
    %1382 = vmatpush1.msra.mxu0 %v105
    %1383 = vmatprep.subr.mxu0 0.0
    %1384 = vmatpush1.msra.mxu0 0.0
    %1385 = vmatprep.subr.mxu0 0.0
    %1386 = vmatpush1.msra.mxu0 0.0
    %1387 = vmatprep.subr.mxu0 0.0
    %1388 = vmatpush1.msra.mxu0 0.0
    %1389 = vmatprep.subr.mxu0 0.0
    %1390 = vmatpush1.msra.mxu0 0.0
    %1391 = vmatprep.subr.mxu0 0.0
    %1392 = vmatpush1.msra.mxu0 0.0
    %1393 = vmatprep.subr.mxu0 0.0
    %1394 = vmatpush1.msra.mxu0 0.0
    %1395 = vmatprep.subr.mxu0 0.0
    %1396 = vmatpush1.msra.mxu0 0.0
    %1397 = vmatprep.subr.mxu0 0.0
    %1398 = vmatpush1.msra.mxu0 0.0
    %1399 = vmatprep.subr.mxu0 0.0
    %1400 = vmatpush1.msra.mxu0 0.0
    %1401 = vmatprep.subr.mxu0 0.0
    %1402 = vmatpush1.msra.mxu0 0.0
    %1403 = vmatprep.subr.mxu0 0.0
    %1404 = vmatpush1.msra.mxu0 0.0
    %1405 = vmatprep.subr.mxu0 0.0
    %1406 = vmatpush1.msra.mxu0 0.0
    %1407 = vmatprep.subr.mxu0 0.0
    %1408 = vmatpush1.msra.mxu0 0.0
    %1409 = vmatprep.subr.mxu0 0.0
    %1410 = vmatpush1.msra.mxu0 0.0
    %1411 = vmatprep.subr.mxu0 0.0
    %1412 = vmatpush1.msra.mxu0 0.0
    %1413 = vmatprep.subr.mxu0 0.0
    %1414 = vmatpush1.msra.mxu0 0.0
    %1415 = vmatprep.mubr.f32.mxu0 0.0
    %1416 = vmatmul.mubr.f32.gmra.mrb[0].mxu0 %v1345
    %v1417 = vpop.f32.mrb[0].mxu0
    %v1418 = vadd.f32 0.0, %v1417
    %v1419 = vpop.f32.mrb[0].mxu0
    %v1420 = vadd.f32 0.0, %v1419
    %1421 = vdwg.mxu0
    %1422 = vmatprep.subr.mxu0 %v48
    %1423 = vmatpush1.msra.mxu0 %v47
    %1424 = vmatprep.subr.mxu0 %v52
    %1425 = vmatpush1.msra.mxu0 %v51
    %1426 = vmatprep.subr.mxu0 %v56
    %1427 = vmatpush1.msra.mxu0 %v55
    %1428 = vmatprep.subr.mxu0 %v60
    %1429 = vmatpush1.msra.mxu0 %v59
    %1430 = vmatprep.subr.mxu0 %v64
    %1431 = vmatpush1.msra.mxu0 %v63
    %1432 = vmatprep.subr.mxu0 %v68
    %1433 = vmatpush1.msra.mxu0 %v67
    %1434 = vmatprep.subr.mxu0 %v72
    %1435 = vmatpush1.msra.mxu0 %v71
    %1436 = vmatprep.subr.mxu0 %v76
    %1437 = vmatpush1.msra.mxu0 %v75
    %1438 = vmatprep.subr.mxu0 %v80
    %1439 = vmatpush1.msra.mxu0 %v79
    %1440 = vmatprep.subr.mxu0 %v84
    %1441 = vmatpush1.msra.mxu0 %v83
    %1442 = vmatprep.subr.mxu0 %v88
    %1443 = vmatpush1.msra.mxu0 %v87
    %1444 = vmatprep.subr.mxu0 %v92
    %1445 = vmatpush1.msra.mxu0 %v91
    %1446 = vmatprep.subr.mxu0 %v96
    %1447 = vmatpush1.msra.mxu0 %v95
    %1448 = vmatprep.subr.mxu0 %v100
    %1449 = vmatpush1.msra.mxu0 %v99
    %1450 = vmatprep.subr.mxu0 %v104
    %1451 = vmatpush1.msra.mxu0 %v103
    %1452 = vmatprep.subr.mxu0 %v108
    %1453 = vmatpush1.msra.mxu0 %v107
    %1454 = vmatprep.subr.mxu0 0.0
    %1455 = vmatpush1.msra.mxu0 0.0
    %1456 = vmatprep.subr.mxu0 0.0
    %1457 = vmatpush1.msra.mxu0 0.0
    %1458 = vmatprep.subr.mxu0 0.0
    %1459 = vmatpush1.msra.mxu0 0.0
    %1460 = vmatprep.subr.mxu0 0.0
    %1461 = vmatpush1.msra.mxu0 0.0
    %1462 = vmatprep.subr.mxu0 0.0
    %1463 = vmatpush1.msra.mxu0 0.0
    %1464 = vmatprep.subr.mxu0 0.0
    %1465 = vmatpush1.msra.mxu0 0.0
    %1466 = vmatprep.subr.mxu0 0.0
    %1467 = vmatpush1.msra.mxu0 0.0
    %1468 = vmatprep.subr.mxu0 0.0
    %1469 = vmatpush1.msra.mxu0 0.0
    %1470 = vmatprep.subr.mxu0 0.0
    %1471 = vmatpush1.msra.mxu0 0.0
    %1472 = vmatprep.subr.mxu0 0.0
    %1473 = vmatpush1.msra.mxu0 0.0
    %1474 = vmatprep.subr.mxu0 0.0
    %1475 = vmatpush1.msra.mxu0 0.0
    %1476 = vmatprep.subr.mxu0 0.0
    %1477 = vmatpush1.msra.mxu0 0.0
    %1478 = vmatprep.subr.mxu0 0.0
    %1479 = vmatpush1.msra.mxu0 0.0
    %1480 = vmatprep.subr.mxu0 0.0
    %1481 = vmatpush1.msra.mxu0 0.0
    %1482 = vmatprep.subr.mxu0 0.0
    %1483 = vmatpush1.msra.mxu0 0.0
    %1484 = vmatprep.subr.mxu0 0.0
    %1485 = vmatpush1.msra.mxu0 0.0
    %1486 = vmatprep.mubr.f32.mxu0 0.0
    %1487 = vmatmul.mubr.f32.gmra.mrb[0].mxu0 %v1345
    %v1488 = vpop.f32.mrb[0].mxu0
    %v1489 = vadd.f32 0.0, %v1488
    %v1490 = vpop.f32.mrb[0].mxu0
    %v1491 = vadd.f32 0.0, %v1490
    %1492 = vdwg.mxu0
    %v1493 = vadd.f32 %v1347, %v1418
    %v1494 = vadd.f32 %v1348, %v1420
    %v1495 = vadd.f32 %v1349, %v1489
    %v1496 = vadd.f32 %v1350, %v1491
    %v1497 = vxor.u32 %v1493, 2147483648
    %v1498 = vmul.f32 %v1497, 1.442695
    %v1499 = vpow.pop %v1498
    %v1500 = vadd.f32 %v1499, 1.0
    %v1501 = vrcp.pop %v1500
    %v1502 = vmul.f32 1.0, %v1501
    %v1503 = vxor.u32 %v1494, 2147483648
    %v1504 = vmul.f32 %v1503, 1.442695
    %v1505 = vpow.pop %v1504
    %v1506 = vadd.f32 %v1505, 1.0
    %v1507 = vrcp.pop %v1506
    %v1508 = vmul.f32 1.0, %v1507
    %v1509 = vtanh.pop %v1495
    %v1510 = vxor.u32 %v1496, 2147483648
    %v1511 = vmul.f32 %v1510, 1.442695
    %v1512 = vpow.pop %v1511
    %v1513 = vadd.f32 %v1512, 1.0
    %v1514 = vrcp.pop %v1513
    %v1515 = vmul.f32 1.0, %v1514
    %v1516 = vmul.f32 %v1508, %v1343
    %v1517 = vmul.f32 %v1502, %v1509
    %v1518 = vadd.f32 %v1516, %v1517
    %v1519 = vtanh.pop %v1518
    %v1520 = vmul.f32 %v1515, %v1519
    %s1521 = scalar_lea.vmem [#allocation2], 224
    %v1522 = vld [vmem:[%s1521] sm:$0xff]
    %v1523 = vld [vmem:[%s1521 + $0x8] sm:$0xff]
    %v1524 = vld [vmem:[%s1521 + $0x10] sm:$0xff]
    %v1525 = vld [vmem:[%s1521 + $0x18] sm:$0xff]
    %1526 = vmatprep.subr.mxu0 %v46
    %1527 = vmatpush1.msra.mxu0 %v45
    %1528 = vmatprep.subr.mxu0 %v50
    %1529 = vmatpush1.msra.mxu0 %v49
    %1530 = vmatprep.subr.mxu0 %v54
    %1531 = vmatpush1.msra.mxu0 %v53
    %1532 = vmatprep.subr.mxu0 %v58
    %1533 = vmatpush1.msra.mxu0 %v57
    %1534 = vmatprep.subr.mxu0 %v62
    %1535 = vmatpush1.msra.mxu0 %v61
    %1536 = vmatprep.subr.mxu0 %v66
    %1537 = vmatpush1.msra.mxu0 %v65
    %1538 = vmatprep.subr.mxu0 %v70
    %1539 = vmatpush1.msra.mxu0 %v69
    %1540 = vmatprep.subr.mxu0 %v74
    %1541 = vmatpush1.msra.mxu0 %v73
    %1542 = vmatprep.subr.mxu0 %v78
    %1543 = vmatpush1.msra.mxu0 %v77
    %1544 = vmatprep.subr.mxu0 %v82
    %1545 = vmatpush1.msra.mxu0 %v81
    %1546 = vmatprep.subr.mxu0 %v86
    %1547 = vmatpush1.msra.mxu0 %v85
    %1548 = vmatprep.subr.mxu0 %v90
    %1549 = vmatpush1.msra.mxu0 %v89
    %1550 = vmatprep.subr.mxu0 %v94
    %1551 = vmatpush1.msra.mxu0 %v93
    %1552 = vmatprep.subr.mxu0 %v98
    %1553 = vmatpush1.msra.mxu0 %v97
    %1554 = vmatprep.subr.mxu0 %v102
    %1555 = vmatpush1.msra.mxu0 %v101
    %1556 = vmatprep.subr.mxu0 %v106
    %1557 = vmatpush1.msra.mxu0 %v105
    %1558 = vmatprep.subr.mxu0 0.0
    %1559 = vmatpush1.msra.mxu0 0.0
    %1560 = vmatprep.subr.mxu0 0.0
    %1561 = vmatpush1.msra.mxu0 0.0
    %1562 = vmatprep.subr.mxu0 0.0
    %1563 = vmatpush1.msra.mxu0 0.0
    %1564 = vmatprep.subr.mxu0 0.0
    %1565 = vmatpush1.msra.mxu0 0.0
    %1566 = vmatprep.subr.mxu0 0.0
    %1567 = vmatpush1.msra.mxu0 0.0
    %1568 = vmatprep.subr.mxu0 0.0
    %1569 = vmatpush1.msra.mxu0 0.0
    %1570 = vmatprep.subr.mxu0 0.0
    %1571 = vmatpush1.msra.mxu0 0.0
    %1572 = vmatprep.subr.mxu0 0.0
    %1573 = vmatpush1.msra.mxu0 0.0
    %1574 = vmatprep.subr.mxu0 0.0
    %1575 = vmatpush1.msra.mxu0 0.0
    %1576 = vmatprep.subr.mxu0 0.0
    %1577 = vmatpush1.msra.mxu0 0.0
    %1578 = vmatprep.subr.mxu0 0.0
    %1579 = vmatpush1.msra.mxu0 0.0
    %1580 = vmatprep.subr.mxu0 0.0
    %1581 = vmatpush1.msra.mxu0 0.0
    %1582 = vmatprep.subr.mxu0 0.0
    %1583 = vmatpush1.msra.mxu0 0.0
    %1584 = vmatprep.subr.mxu0 0.0
    %1585 = vmatpush1.msra.mxu0 0.0
    %1586 = vmatprep.subr.mxu0 0.0
    %1587 = vmatpush1.msra.mxu0 0.0
    %1588 = vmatprep.subr.mxu0 0.0
    %1589 = vmatpush1.msra.mxu0 0.0
    %1590 = vmatprep.mubr.f32.mxu0 0.0
    %1591 = vmatmul.mubr.f32.gmra.mrb[0].mxu0 %v1520
    %v1592 = vpop.f32.mrb[0].mxu0
    %v1593 = vadd.f32 0.0, %v1592
    %v1594 = vpop.f32.mrb[0].mxu0
    %v1595 = vadd.f32 0.0, %v1594
    %1596 = vdwg.mxu0
    %1597 = vmatprep.subr.mxu0 %v48
    %1598 = vmatpush1.msra.mxu0 %v47
    %1599 = vmatprep.subr.mxu0 %v52
    %1600 = vmatpush1.msra.mxu0 %v51
    %1601 = vmatprep.subr.mxu0 %v56
    %1602 = vmatpush1.msra.mxu0 %v55
    %1603 = vmatprep.subr.mxu0 %v60
    %1604 = vmatpush1.msra.mxu0 %v59
    %1605 = vmatprep.subr.mxu0 %v64
    %1606 = vmatpush1.msra.mxu0 %v63
    %1607 = vmatprep.subr.mxu0 %v68
    %1608 = vmatpush1.msra.mxu0 %v67
    %1609 = vmatprep.subr.mxu0 %v72
    %1610 = vmatpush1.msra.mxu0 %v71
    %1611 = vmatprep.subr.mxu0 %v76
    %1612 = vmatpush1.msra.mxu0 %v75
    %1613 = vmatprep.subr.mxu0 %v80
    %1614 = vmatpush1.msra.mxu0 %v79
    %1615 = vmatprep.subr.mxu0 %v84
    %1616 = vmatpush1.msra.mxu0 %v83
    %1617 = vmatprep.subr.mxu0 %v88
    %1618 = vmatpush1.msra.mxu0 %v87
    %1619 = vmatprep.subr.mxu0 %v92
    %1620 = vmatpush1.msra.mxu0 %v91
    %1621 = vmatprep.subr.mxu0 %v96
    %1622 = vmatpush1.msra.mxu0 %v95
    %1623 = vmatprep.subr.mxu0 %v100
    %1624 = vmatpush1.msra.mxu0 %v99
    %1625 = vmatprep.subr.mxu0 %v104
    %1626 = vmatpush1.msra.mxu0 %v103
    %1627 = vmatprep.subr.mxu0 %v108
    %1628 = vmatpush1.msra.mxu0 %v107
    %1629 = vmatprep.subr.mxu0 0.0
    %1630 = vmatpush1.msra.mxu0 0.0
    %1631 = vmatprep.subr.mxu0 0.0
    %1632 = vmatpush1.msra.mxu0 0.0
    %1633 = vmatprep.subr.mxu0 0.0
    %1634 = vmatpush1.msra.mxu0 0.0
    %1635 = vmatprep.subr.mxu0 0.0
    %1636 = vmatpush1.msra.mxu0 0.0
    %1637 = vmatprep.subr.mxu0 0.0
    %1638 = vmatpush1.msra.mxu0 0.0
    %1639 = vmatprep.subr.mxu0 0.0
    %1640 = vmatpush1.msra.mxu0 0.0
    %1641 = vmatprep.subr.mxu0 0.0
    %1642 = vmatpush1.msra.mxu0 0.0
    %1643 = vmatprep.subr.mxu0 0.0
    %1644 = vmatpush1.msra.mxu0 0.0
    %1645 = vmatprep.subr.mxu0 0.0
    %1646 = vmatpush1.msra.mxu0 0.0
    %1647 = vmatprep.subr.mxu0 0.0
    %1648 = vmatpush1.msra.mxu0 0.0
    %1649 = vmatprep.subr.mxu0 0.0
    %1650 = vmatpush1.msra.mxu0 0.0
    %1651 = vmatprep.subr.mxu0 0.0
    %1652 = vmatpush1.msra.mxu0 0.0
    %1653 = vmatprep.subr.mxu0 0.0
    %1654 = vmatpush1.msra.mxu0 0.0
    %1655 = vmatprep.subr.mxu0 0.0
    %1656 = vmatpush1.msra.mxu0 0.0
    %1657 = vmatprep.subr.mxu0 0.0
    %1658 = vmatpush1.msra.mxu0 0.0
    %1659 = vmatprep.subr.mxu0 0.0
    %1660 = vmatpush1.msra.mxu0 0.0
    %1661 = vmatprep.mubr.f32.mxu0 0.0
    %1662 = vmatmul.mubr.f32.gmra.mrb[0].mxu0 %v1520
    %v1663 = vpop.f32.mrb[0].mxu0
    %v1664 = vadd.f32 0.0, %v1663
    %v1665 = vpop.f32.mrb[0].mxu0
    %v1666 = vadd.f32 0.0, %v1665
    %1667 = vdwg.mxu0
    %v1668 = vadd.f32 %v1522, %v1593
    %v1669 = vadd.f32 %v1523, %v1595
    %v1670 = vadd.f32 %v1524, %v1664
    %v1671 = vadd.f32 %v1525, %v1666
    %v1672 = vxor.u32 %v1668, 2147483648
    %v1673 = vmul.f32 %v1672, 1.442695
    %v1674 = vpow.pop %v1673
    %v1675 = vadd.f32 %v1674, 1.0
    %v1676 = vrcp.pop %v1675
    %v1677 = vmul.f32 1.0, %v1676
    %v1678 = vxor.u32 %v1669, 2147483648
    %v1679 = vmul.f32 %v1678, 1.442695
    %v1680 = vpow.pop %v1679
    %v1681 = vadd.f32 %v1680, 1.0
    %v1682 = vrcp.pop %v1681
    %v1683 = vmul.f32 1.0, %v1682
    %v1684 = vtanh.pop %v1670
    %v1685 = vxor.u32 %v1671, 2147483648
    %v1686 = vmul.f32 %v1685, 1.442695
    %v1687 = vpow.pop %v1686
    %v1688 = vadd.f32 %v1687, 1.0
    %v1689 = vrcp.pop %v1688
    %v1690 = vmul.f32 1.0, %v1689
    %v1691 = vmul.f32 %v1683, %v1518
    %v1692 = vmul.f32 %v1677, %v1684
    %v1693 = vadd.f32 %v1691, %v1692
    %v1694 = vtanh.pop %v1693
    %v1695 = vmul.f32 %v1690, %v1694
    %v1696 = vld [vmem:[%s4] sm:$0xff]
    %v1697 = vld [vmem:[%s4 + $0x8] sm:$0xff]
    %v1698 = vld [vmem:[%s4 + $0x10] sm:$0xff]
    %v1699 = vld [vmem:[%s4 + $0x18] sm:$0xff]
    %v1700 = vld [vmem:[%s4 + $0x20] sm:$0xff]
    %v1701 = vld [vmem:[%s4 + $0x28] sm:$0xff]
    %v1702 = vld [vmem:[%s4 + $0x30] sm:$0xff]
    %v1703 = vld [vmem:[%s4 + $0x38] sm:$0xff]
    %v1704 = vld [vmem:[%s4 + $0x40] sm:$0xff]
    %v1705 = vld [vmem:[%s4 + $0x48] sm:$0xff]
    %v1706 = vld [vmem:[%s4 + $0x50] sm:$0xff]
    %v1707 = vld [vmem:[%s4 + $0x58] sm:$0xff]
    %v1708 = vld [vmem:[%s4 + $0x60] sm:$0xff]
    %v1709 = vld [vmem:[%s4 + $0x68] sm:$0xff]
    %v1710 = vld [vmem:[%s4 + $0x70] sm:$0xff]
    %v1711 = vld [vmem:[%s4 + $0x78] sm:$0xff]
    %v1712 = vld [vmem:[%s5] sm:$0x1]
    %v1714 = vlaneseq
    %v1715 = vshrl.u32 %v1714, 7
    %v1716 = vsub.s32 0, %v1715
    %v1717 = vrot.slane %v1712, %v1716
    %1719 = vmatprep.subr.mxu0 0.0
    %1720 = vmatpush1.msra.mxu0 %v1696
    %1721 = vmatprep.subr.mxu0 0.0
    %1722 = vmatpush1.msra.mxu0 %v1697
    %1723 = vmatprep.subr.mxu0 0.0
    %1724 = vmatpush1.msra.mxu0 %v1698
    %1725 = vmatprep.subr.mxu0 0.0
    %1726 = vmatpush1.msra.mxu0 %v1699
    %1727 = vmatprep.subr.mxu0 0.0
    %1728 = vmatpush1.msra.mxu0 %v1700
    %1729 = vmatprep.subr.mxu0 0.0
    %1730 = vmatpush1.msra.mxu0 %v1701
    %1731 = vmatprep.subr.mxu0 0.0
    %1732 = vmatpush1.msra.mxu0 %v1702
    %1733 = vmatprep.subr.mxu0 0.0
    %1734 = vmatpush1.msra.mxu0 %v1703
    %1735 = vmatprep.subr.mxu0 0.0
    %1736 = vmatpush1.msra.mxu0 %v1704
    %1737 = vmatprep.subr.mxu0 0.0
    %1738 = vmatpush1.msra.mxu0 %v1705
    %1739 = vmatprep.subr.mxu0 0.0
    %1740 = vmatpush1.msra.mxu0 %v1706
    %1741 = vmatprep.subr.mxu0 0.0
    %1742 = vmatpush1.msra.mxu0 %v1707
    %1743 = vmatprep.subr.mxu0 0.0
    %1744 = vmatpush1.msra.mxu0 %v1708
    %1745 = vmatprep.subr.mxu0 0.0
    %1746 = vmatpush1.msra.mxu0 %v1709
    %1747 = vmatprep.subr.mxu0 0.0
    %1748 = vmatpush1.msra.mxu0 %v1710
    %1749 = vmatprep.subr.mxu0 0.0
    %1750 = vmatpush1.msra.mxu0 %v1711
    %1751 = vmatprep.subr.mxu0 0.0
    %1752 = vmatpush1.msra.mxu0 0.0
    %1753 = vmatprep.subr.mxu0 0.0
    %1754 = vmatpush1.msra.mxu0 0.0
    %1755 = vmatprep.subr.mxu0 0.0
    %1756 = vmatpush1.msra.mxu0 0.0
    %1757 = vmatprep.subr.mxu0 0.0
    %1758 = vmatpush1.msra.mxu0 0.0
    %1759 = vmatprep.subr.mxu0 0.0
    %1760 = vmatpush1.msra.mxu0 0.0
    %1761 = vmatprep.subr.mxu0 0.0
    %1762 = vmatpush1.msra.mxu0 0.0
    %1763 = vmatprep.subr.mxu0 0.0
    %1764 = vmatpush1.msra.mxu0 0.0
    %1765 = vmatprep.subr.mxu0 0.0
    %1766 = vmatpush1.msra.mxu0 0.0
    %1767 = vmatprep.subr.mxu0 0.0
    %1768 = vmatpush1.msra.mxu0 0.0
    %1769 = vmatprep.subr.mxu0 0.0
    %1770 = vmatpush1.msra.mxu0 0.0
    %1771 = vmatprep.subr.mxu0 0.0
    %1772 = vmatpush1.msra.mxu0 0.0
    %1773 = vmatprep.subr.mxu0 0.0
    %1774 = vmatpush1.msra.mxu0 0.0
    %1775 = vmatprep.subr.mxu0 0.0
    %1776 = vmatpush1.msra.mxu0 0.0
    %1777 = vmatprep.subr.mxu0 0.0
    %1778 = vmatpush1.msra.mxu0 0.0
    %1779 = vmatprep.subr.mxu0 0.0
    %1780 = vmatpush1.msra.mxu0 0.0
    %1781 = vmatprep.subr.mxu0 0.0
    %1782 = vmatpush1.msra.mxu0 0.0
    %1783 = vmatprep.mubr.f32.mxu0 0.0
    %1784 = vmatmul.mubr.f32.gmra.mrb[0].mxu0 %v1695
    %v1785 = vpop.f32.mrb[0].mxu0
    %v1786 = vadd.f32 %v1717, %v1785
    %v1787 = vpop.f32.mrb[0].mxu0
    %1788 = vdwg.mxu0
    %v1789 = vmax.f32 %v1786, 0.0
    %v1790 = vld [vmem:[%s6] sm:$0xff]
    %v1791 = vld [vmem:[%s6 + $0x8] sm:$0xff]
    %v1792 = vld [vmem:[%s6 + $0x10] sm:$0xff]
    %v1793 = vld [vmem:[%s6 + $0x18] sm:$0xff]
    %1798 = vset.pattern.permute.xlu0 0
    %1799 = vperm.xlu0 %1798, %v1790
    %v1800 = vpop.permute.xlu0 %1799
    %1801 = vset.pattern.permute.xlu0 0
    %1802 = vperm.xlu0 %1801, %v1791
    %v1803 = vpop.permute.xlu0 %1802
    %1804 = vset.pattern.permute.xlu0 0
    %1805 = vperm.xlu0 %1804, %v1792
    %v1806 = vpop.permute.xlu0 %1805
    %1807 = vset.pattern.permute.xlu0 0
    %1808 = vperm.xlu0 %1807, %v1793
    %v1809 = vpop.permute.xlu0 %1808
    %v1810 = vlaneseq
    %v1811 = vand.u32 %v1810, 127
    %v1812 = vlaneseq
    %v1813 = vshrl.u32 %v1812, 7
    %v1814 = vsub.s32 %v1811, %v1813
    %v1815 = vrot.slane %v1800, %v1814
    %v1816 = vadd.s32 %v1811, 4294967288
    %v1817 = vlaneseq
    %v1818 = vshrl.u32 %v1817, 7
    %v1819 = vsub.s32 %v1816, %v1818
    %v1820 = vrot.slane %v1803, %v1819
    %vm1821 = vcmask 130112
    %v1822 = vsel %vm1821, %v1820, %v1815
    %v1823 = vadd.s32 %v1811, 4294967280
    %v1824 = vlaneseq
    %v1825 = vshrl.u32 %v1824, 7
    %v1826 = vsub.s32 %v1823, %v1825
    %v1827 = vrot.slane %v1806, %v1826
    %vm1828 = vcmask 195712
    %v1829 = vsel %vm1828, %v1827, %v1822
    %v1830 = vadd.s32 %v1811, 4294967272
    %v1831 = vlaneseq
    %v1832 = vshrl.u32 %v1831, 7
    %v1833 = vsub.s32 %v1830, %v1832
    %v1834 = vrot.slane %v1809, %v1833
    %vm1835 = vcmask 261312
    %v1836 = vsel %vm1835, %v1834, %v1829
    %vm1837 = vcmask 1042434
    %v1838 = vsel %vm1837, %v1836, %v1836
    %vm1839 = vcmask 1043459
    %v1840 = vsel %vm1839, %v1836, %v1838
    %vm1841 = vcmask 1044484
    %v1842 = vsel %vm1841, %v1836, %v1840
    %vm1843 = vcmask 1045509
    %v1844 = vsel %vm1843, %v1836, %v1842
    %vm1845 = vcmask 1046534
    %v1846 = vsel %vm1845, %v1836, %v1844
    %vm1847 = vcmask 1047559
    %v1848 = vsel %vm1847, %v1836, %v1846
    %v1850 = vmul.f32 %v1789, %v1848
    %vm1851 = vcmask 261120
    %v1852 = vsel %vm1851, %v1850, 0.0
    %1853 = vadd.xlane.f32.xlu0 %v1852
    %v1854 = vpop.xlane.xlu0 %1853
    %v1855 = vld [vmem:[#allocation3] sm:$0x1]
    %v1857 = vlaneseq
    %v1858 = vshrl.u32 %v1857, 7
    %v1859 = vsub.s32 0, %v1858
    %v1860 = vrot.slane %v1855, %v1859
    %v1862 = vadd.f32 %v1854, %v1860
    %vm1863 = vcmask 7168
    %1864 = vst.msk [vmem:[%s8] sm:$0xff] %vm1863, %v1862
    // Predicated region
    $region38: #{tpu_custom_call.1} parent=1 // pred_check
      _
    $region39: #{tpu_custom_call.1} parent=1 // pred_check_branch
      %1866 = sbr.rel (0) target = $region41
    $region40: #{tpu_custom_call.1} parent=1 // pred_region
      _
    $region41: #{tpu_custom_call.1} parent=1 // pred_fallthru
      _
    // Predicated region
    $region42: #{tpu_custom_call.1} parent=1 // pred_check
      _
    $region43: #{tpu_custom_call.1} parent=1 // pred_check_branch
      %1868 = sbr.rel (0) target = $region45
    $region44: #{tpu_custom_call.1} parent=1 // pred_region
      _
    $region45: #{tpu_custom_call.1} parent=1 // pred_fallthru
      _
    %1869 = vsyncpa [#allocation5], 1

</llo_original>
